<compile_context>
chip_gen: v7x
topology: tpu7x:2x2x1
jax: 0.10.0
libtpu: 0.0.40
codegen_flags: <defaults>
</compile_context>

<pallas_src>
import jax
import jax.numpy as jnp
from jax.experimental import pallas as pl
from jax.experimental.pallas import tpu as pltpu


def _round_up(x, m):
    return ((x + m - 1) // m) * m


# ----------------------------- Pallas kernel ------------------------------
def demand_kernel(tod_ref, dow_ref, feat_ref,
                  w1t_ref, w1d_ref, w1f_ref, b1_ref,
                  w2_ref, b2_ref,
                  w3_ref, b3_ref,
                  w4_ref, b4_ref,
                  w5_ref, b5_ref,
                  w6_ref, b6_ref,
                  out_ref):
    f32 = jnp.float32
    wd = w1t_ref.dtype                      # narrow weight dtype (bf16)
    tb = tod_ref.shape[0]
    vocab = w1t_ref.shape[0]                # 24

    # Embedding lookup fused into mlp1.linear1: the embedding tables were
    # folded into W1 offline, so one-hot @ folded-W1 both gathers the
    # embedding row and applies the first matmul in a single MXU push.
    iota = jax.lax.broadcasted_iota(jnp.int32, (tb, vocab), 1)
    tod_oh = (iota == tod_ref[...]).astype(wd)           # (tb, 24)
    dow_oh = (iota == dow_ref[...]).astype(wd)           # (tb, 24)

    # mlp1.linear1 on cat([tod, dow, features], 1) == sum of split matmuls.
    h = (jnp.dot(tod_oh, w1t_ref[...], preferred_element_type=f32)
         + jnp.dot(dow_oh, w1d_ref[...], preferred_element_type=f32)
         + jnp.dot(feat_ref[...].astype(wd), w1f_ref[...],
                   preferred_element_type=f32)
         + b1_ref[...])
    h = jnp.maximum(h, 0.0)                              # ReLU (f32 elementwise)
    # mlp1.linear2 (dropout == identity in eval mode)
    h = jnp.dot(h.astype(wd), w2_ref[...], preferred_element_type=f32) + b2_ref[...]

    # mlp2 (SkipMLP): linear1 -> ReLU -> linear2 + residual
    s = jnp.maximum(
        jnp.dot(h.astype(wd), w3_ref[...], preferred_element_type=f32) + b3_ref[...],
        0.0)
    h = jnp.dot(s.astype(wd), w4_ref[...], preferred_element_type=f32) + b4_ref[...] + h

    # mlp3: linear1 -> ReLU -> linear2 (output columns zero-padded to 128 lanes)
    s = jnp.maximum(
        jnp.dot(h.astype(wd), w5_ref[...], preferred_element_type=f32) + b5_ref[...],
        0.0)
    y = jnp.dot(s.astype(wd), w6_ref[...], preferred_element_type=f32) + b6_ref[...]

    # clamp_min(0); lane-dense (tb, 128) store.
    out_ref[...] = jnp.maximum(y, 0.0)


# ------------------------------ wrapper -----------------------------------
def demand_model_forward(time_of_day, day_of_week, features, kparams, n_targets,
                         *, tb=512):
    """time_of_day/day_of_week: (B,) ints in [0, 24); features: (B, F) f32."""
    B, F = features.shape
    H = kparams["w2"].shape[0]
    out_pad = kparams["w6"].shape[1]        # n_targets rounded up to 128

    # Batch tile: multiple of 8 sublanes; pad B up to a whole number of tiles.
    tb = min(tb, _round_up(B, 8))
    b_pad = pl.cdiv(B, tb) * tb
    if b_pad != B:
        pad = b_pad - B
        time_of_day = jnp.pad(time_of_day, (0, pad))
        day_of_week = jnp.pad(day_of_week, (0, pad))
        features = jnp.pad(features, ((0, pad), (0, 0)))

    tod = time_of_day.astype(jnp.int32).reshape(b_pad, 1)
    dow = day_of_week.astype(jnp.int32).reshape(b_pad, 1)
    feat = features.astype(jnp.float32)

    weight_order = ("w1_tod", "w1_dow", "w1_feat", "b1", "w2", "b2",
                    "w3", "b3", "w4", "b4", "w5", "b5", "w6", "b6")
    weights = tuple(kparams[k] for k in weight_order)

    def tiled(shape):
        return pl.BlockSpec(shape, lambda i: (i, 0))

    def resident(arr):
        return pl.BlockSpec(arr.shape, lambda i: (0, 0))

    in_specs = ([tiled((tb, 1)), tiled((tb, 1)), tiled((tb, F))]
                + [resident(w) for w in weights])
    out_specs = tiled((tb, out_pad))

    weight_bytes = sum(int(w.size) * w.dtype.itemsize for w in weights)
    act_bytes = b_pad * (4 + 4 + 4 * F + 4 * out_pad)
    flops = 2 * b_pad * ((2 * 24 + F) * H + 4 * H * H + H * out_pad)
    cost = pl.CostEstimate(flops=flops, transcendentals=0,
                           bytes_accessed=act_bytes + weight_bytes)

    out = pl.pallas_call(
        demand_kernel,
        out_shape=jax.ShapeDtypeStruct((b_pad, out_pad), jnp.float32),
        grid_spec=pltpu.PrefetchScalarGridSpec(
            num_scalar_prefetch=0,
            grid=(b_pad // tb,),
            in_specs=in_specs,
            out_specs=out_specs),
        compiler_params=pltpu.CompilerParams(
            dimension_semantics=("parallel",)),
        cost_estimate=cost,
    )(tod, dow, feat, *weights)

    return out[:B, :n_targets]


# -------------------------- parameter construction ------------------------
def init_params(key, n_features, n_targets, n_hidden, emb_dim):
    """Full-precision 'PyTorch-style' parameters (Linear weights stored (in, out))."""
    ks = jax.random.split(key, 8)
    n_in = n_features + 2 * emb_dim

    def lin(k, fan_in, fan_out):
        kw, kb = jax.random.split(k)
        bound = 1.0 / jnp.sqrt(jnp.float32(fan_in))
        w = jax.random.uniform(kw, (fan_in, fan_out), jnp.float32, -bound, bound)
        b = jax.random.uniform(kb, (1, fan_out), jnp.float32, -bound, bound)
        return w, b

    tod_emb = jax.random.normal(ks[0], (24, emb_dim), jnp.float32)
    dow_emb = jax.random.normal(ks[1], (24, emb_dim), jnp.float32)
    w1, b1 = lin(ks[2], n_in, n_hidden)          # mlp1.linear1
    w2, b2 = lin(ks[3], n_hidden, n_hidden)      # mlp1.linear2
    w3, b3 = lin(ks[4], n_hidden, n_hidden)      # mlp2.linear1
    w4, b4 = lin(ks[5], n_hidden, n_hidden)      # mlp2.linear2
    w5, b5 = lin(ks[6], n_hidden, n_hidden)      # mlp3.linear1
    w6, b6 = lin(ks[7], n_hidden, n_targets)     # mlp3.linear2
    return dict(tod_emb=tod_emb, dow_emb=dow_emb, w1=w1, b1=b1, w2=w2, b2=b2,
                w3=w3, b3=b3, w4=w4, b4=b4, w5=w5, b5=b5, w6=w6, b6=b6)


def prepare_kernel_params(raw, n_targets, weight_dtype=jnp.bfloat16):
    """Fold embeddings into W1, pad the output projection to 128 lanes,
    cast weights to bf16 (biases stay f32)."""
    emb_dim = raw["tod_emb"].shape[1]
    H = raw["w1"].shape[1]
    out_pad = _round_up(max(n_targets, 1), 128)

    w1_tod = raw["tod_emb"] @ raw["w1"][:emb_dim]                 # (24, H)
    w1_dow = raw["dow_emb"] @ raw["w1"][emb_dim:2 * emb_dim]      # (24, H)
    w1_feat = raw["w1"][2 * emb_dim:]                             # (F, H)

    w6 = jnp.zeros((H, out_pad), jnp.float32).at[:, :n_targets].set(raw["w6"])
    b6 = jnp.zeros((1, out_pad), jnp.float32).at[:, :n_targets].set(raw["b6"])

    wd = weight_dtype
    return {
        "w1_tod": w1_tod.astype(wd), "w1_dow": w1_dow.astype(wd),
        "w1_feat": w1_feat.astype(wd), "b1": raw["b1"],
        "w2": raw["w2"].astype(wd), "b2": raw["b2"],
        "w3": raw["w3"].astype(wd), "b3": raw["b3"],
        "w4": raw["w4"].astype(wd), "b4": raw["b4"],
        "w5": raw["w5"].astype(wd), "b5": raw["b5"],
        "w6": w6.astype(wd), "b6": b6,
    }


# --------------------------- pure-JAX reference ----------------------------
def reference_forward(time_of_day, day_of_week, features, raw):
    tod = raw["tod_emb"][time_of_day]
    dow = raw["dow_emb"][day_of_week]
    x = jnp.concatenate([tod, dow, features], axis=1)
    h = jax.nn.relu(x @ raw["w1"] + raw["b1"])
    h = h @ raw["w2"] + raw["b2"]
    s = jax.nn.relu(h @ raw["w3"] + raw["b3"])
    h = s @ raw["w4"] + raw["b4"] + h
    s = jax.nn.relu(h @ raw["w5"] + raw["b5"])
    y = s @ raw["w6"] + raw["b6"]
    return jnp.maximum(y, 0.0)


if __name__ == "__main__":
    # TODO(synk): dropout is implemented as inference-mode identity (no RNG masking).
    B, n_features, n_targets, n_hidden, emb_dim = 256, 6, 4, 32, 8

    key = jax.random.PRNGKey(0)
    k_tod, k_dow, k_feat, k_params = jax.random.split(key, 4)

    time_of_day = jax.random.randint(k_tod, (B,), 0, 24, dtype=jnp.int32)
    day_of_week = jax.random.randint(k_dow, (B,), 0, 7, dtype=jnp.int32)
    features = jax.random.normal(k_feat, (B, n_features), jnp.float32)

    raw = init_params(k_params, n_features, n_targets, n_hidden, emb_dim)
    kparams = prepare_kernel_params(raw, n_targets)

    out = demand_model_forward(time_of_day, day_of_week, features, kparams,
                               n_targets, tb=128)
    out = jax.block_until_ready(out)

    ref = reference_forward(time_of_day, day_of_week, features, raw)
    assert out.shape == (B, n_targets)
    # bf16 weights/matmul inputs with f32 accumulation: loosened tolerance vs
    # the full-f32 reference (expected precision change, not a bug).
    assert jnp.allclose(out, ref, atol=5e-2, rtol=5e-2), "mismatch vs reference"

    print("KERNEL_OK")
</pallas_src>

<mosaic_0001>
module attributes {stable_mosaic.version = 11 : i64} {
  func.func @demand_kernel(%arg0: i32, %arg1: memref<128x1xi32, #tpu.memory_space<vmem>>, %arg2: memref<128x1xi32, #tpu.memory_space<vmem>>, %arg3: memref<128x6xf32, #tpu.memory_space<vmem>>, %arg4: memref<24x32xbf16, #tpu.memory_space<vmem>>, %arg5: memref<24x32xbf16, #tpu.memory_space<vmem>>, %arg6: memref<6x32xbf16, #tpu.memory_space<vmem>>, %arg7: memref<1x32xf32, #tpu.memory_space<vmem>>, %arg8: memref<32x32xbf16, #tpu.memory_space<vmem>>, %arg9: memref<1x32xf32, #tpu.memory_space<vmem>>, %arg10: memref<32x32xbf16, #tpu.memory_space<vmem>>, %arg11: memref<1x32xf32, #tpu.memory_space<vmem>>, %arg12: memref<32x32xbf16, #tpu.memory_space<vmem>>, %arg13: memref<1x32xf32, #tpu.memory_space<vmem>>, %arg14: memref<32x32xbf16, #tpu.memory_space<vmem>>, %arg15: memref<1x32xf32, #tpu.memory_space<vmem>>, %arg16: memref<32x128xbf16, #tpu.memory_space<vmem>>, %arg17: memref<1x128xf32, #tpu.memory_space<vmem>>, %arg18: memref<128x128xf32, #tpu.memory_space<vmem>>) attributes {dimension_semantics = [#tpu.dimension_semantics<parallel>], iteration_bounds = array<i64: 2>, scalar_prefetch = 0 : i64, scratch_operands = 0 : i64, tpu.core_type = #tpu.core_type<tc>, window_params = [{transform_indices = @transform_0, window_bounds = array<i64: 128, 1>}, {transform_indices = @transform_1, window_bounds = array<i64: 128, 1>}, {transform_indices = @transform_2, window_bounds = array<i64: 128, 6>}, {pipeline_mode = #tpu.pipeline_mode<synchronous>, transform_indices = @transform_3, window_bounds = array<i64: 24, 32>}, {pipeline_mode = #tpu.pipeline_mode<synchronous>, transform_indices = @transform_4, window_bounds = array<i64: 24, 32>}, {pipeline_mode = #tpu.pipeline_mode<synchronous>, transform_indices = @transform_5, window_bounds = array<i64: 6, 32>}, {pipeline_mode = #tpu.pipeline_mode<synchronous>, transform_indices = @transform_6, window_bounds = array<i64: 1, 32>}, {pipeline_mode = #tpu.pipeline_mode<synchronous>, transform_indices = @transform_7, window_bounds = array<i64: 32, 32>}, {pipeline_mode = #tpu.pipeline_mode<synchronous>, transform_indices = @transform_8, window_bounds = array<i64: 1, 32>}, {pipeline_mode = #tpu.pipeline_mode<synchronous>, transform_indices = @transform_9, window_bounds = array<i64: 32, 32>}, {pipeline_mode = #tpu.pipeline_mode<synchronous>, transform_indices = @transform_10, window_bounds = array<i64: 1, 32>}, {pipeline_mode = #tpu.pipeline_mode<synchronous>, transform_indices = @transform_11, window_bounds = array<i64: 32, 32>}, {pipeline_mode = #tpu.pipeline_mode<synchronous>, transform_indices = @transform_12, window_bounds = array<i64: 1, 32>}, {pipeline_mode = #tpu.pipeline_mode<synchronous>, transform_indices = @transform_13, window_bounds = array<i64: 32, 32>}, {pipeline_mode = #tpu.pipeline_mode<synchronous>, transform_indices = @transform_14, window_bounds = array<i64: 1, 32>}, {pipeline_mode = #tpu.pipeline_mode<synchronous>, transform_indices = @transform_15, window_bounds = array<i64: 32, 128>}, {pipeline_mode = #tpu.pipeline_mode<synchronous>, transform_indices = @transform_16, window_bounds = array<i64: 1, 128>}, {transform_indices = @transform_17, window_bounds = array<i64: 128, 128>}]} {
    %0 = tpu.iota {dimensions = array<i32: 1>} : vector<128x24xi32>
    %c0 = arith.constant 0 : index
    %c0_0 = arith.constant 0 : index
    %1 = vector.load %arg1[%c0, %c0_0] : memref<128x1xi32, #tpu.memory_space<vmem>>, vector<128x1xi32>
    %2 = vector.broadcast %1 : vector<128x1xi32> to vector<128x24xi32>
    %3 = arith.cmpi eq, %0, %2 : vector<128x24xi32>
    %4 = arith.extui %3 : vector<128x24xi1> to vector<128x24xi32>
    %5 = arith.sitofp %4 : vector<128x24xi32> to vector<128x24xf32>
    %6 = arith.truncf %5 : vector<128x24xf32> to vector<128x24xbf16>
    %c0_1 = arith.constant 0 : index
    %c0_2 = arith.constant 0 : index
    %7 = vector.load %arg2[%c0_1, %c0_2] : memref<128x1xi32, #tpu.memory_space<vmem>>, vector<128x1xi32>
    %8 = vector.broadcast %7 : vector<128x1xi32> to vector<128x24xi32>
    %9 = arith.cmpi eq, %0, %8 : vector<128x24xi32>
    %10 = arith.extui %9 : vector<128x24xi1> to vector<128x24xi32>
    %11 = arith.sitofp %10 : vector<128x24xi32> to vector<128x24xf32>
    %12 = arith.truncf %11 : vector<128x24xf32> to vector<128x24xbf16>
    %c0_3 = arith.constant 0 : index
    %c0_4 = arith.constant 0 : index
    %13 = vector.load %arg4[%c0_3, %c0_4] : memref<24x32xbf16, #tpu.memory_space<vmem>>, vector<24x32xbf16>
    %cst = arith.constant dense<0.000000e+00> : vector<128x32xf32>
    %14 = tpu.matmul %6, %13, %cst {dimension_numbers = #tpu.dot_dimension_numbers<[1], [0], [0], [1], [0, 0, 1, 1], [], []>} : vector<128x24xbf16>, vector<24x32xbf16>, vector<128x32xf32> -> vector<128x32xf32>
    %c0_5 = arith.constant 0 : index
    %c0_6 = arith.constant 0 : index
    %15 = vector.load %arg5[%c0_5, %c0_6] : memref<24x32xbf16, #tpu.memory_space<vmem>>, vector<24x32xbf16>
    %cst_7 = arith.constant dense<0.000000e+00> : vector<128x32xf32>
    %16 = tpu.matmul %12, %15, %cst_7 {dimension_numbers = #tpu.dot_dimension_numbers<[1], [0], [0], [1], [0, 0, 1, 1], [], []>} : vector<128x24xbf16>, vector<24x32xbf16>, vector<128x32xf32> -> vector<128x32xf32>
    %17 = arith.addf %14, %16 : vector<128x32xf32>
    %c0_8 = arith.constant 0 : index
    %c0_9 = arith.constant 0 : index
    %18 = vector.load %arg3[%c0_8, %c0_9] : memref<128x6xf32, #tpu.memory_space<vmem>>, vector<128x6xf32>
    %19 = arith.truncf %18 : vector<128x6xf32> to vector<128x6xbf16>
    %c0_10 = arith.constant 0 : index
    %c0_11 = arith.constant 0 : index
    %20 = vector.load %arg6[%c0_10, %c0_11] : memref<6x32xbf16, #tpu.memory_space<vmem>>, vector<6x32xbf16>
    %cst_12 = arith.constant dense<0.000000e+00> : vector<128x32xf32>
    %21 = tpu.matmul %19, %20, %cst_12 {dimension_numbers = #tpu.dot_dimension_numbers<[1], [0], [0], [1], [0, 0, 1, 1], [], []>} : vector<128x6xbf16>, vector<6x32xbf16>, vector<128x32xf32> -> vector<128x32xf32>
    %22 = arith.addf %17, %21 : vector<128x32xf32>
    %c0_13 = arith.constant 0 : index
    %c0_14 = arith.constant 0 : index
    %23 = vector.load %arg7[%c0_13, %c0_14] : memref<1x32xf32, #tpu.memory_space<vmem>>, vector<1x32xf32>
    %24 = vector.broadcast %23 : vector<1x32xf32> to vector<128x32xf32>
    %25 = arith.addf %22, %24 : vector<128x32xf32>
    %cst_15 = arith.constant 0.000000e+00 : f32
    %26 = vector.broadcast %cst_15 : f32 to vector<128x32xf32>
    %27 = arith.maximumf %25, %26 : vector<128x32xf32>
    %28 = arith.truncf %27 : vector<128x32xf32> to vector<128x32xbf16>
    %c0_16 = arith.constant 0 : index
    %c0_17 = arith.constant 0 : index
    %29 = vector.load %arg8[%c0_16, %c0_17] : memref<32x32xbf16, #tpu.memory_space<vmem>>, vector<32x32xbf16>
    %cst_18 = arith.constant dense<0.000000e+00> : vector<128x32xf32>
    %30 = tpu.matmul %28, %29, %cst_18 {dimension_numbers = #tpu.dot_dimension_numbers<[1], [0], [0], [1], [0, 0, 1, 1], [], []>} : vector<128x32xbf16>, vector<32x32xbf16>, vector<128x32xf32> -> vector<128x32xf32>
    %c0_19 = arith.constant 0 : index
    %c0_20 = arith.constant 0 : index
    %31 = vector.load %arg9[%c0_19, %c0_20] : memref<1x32xf32, #tpu.memory_space<vmem>>, vector<1x32xf32>
    %32 = vector.broadcast %31 : vector<1x32xf32> to vector<128x32xf32>
    %33 = arith.addf %30, %32 : vector<128x32xf32>
    %34 = arith.truncf %33 : vector<128x32xf32> to vector<128x32xbf16>
    %c0_21 = arith.constant 0 : index
    %c0_22 = arith.constant 0 : index
    %35 = vector.load %arg10[%c0_21, %c0_22] : memref<32x32xbf16, #tpu.memory_space<vmem>>, vector<32x32xbf16>
    %cst_23 = arith.constant dense<0.000000e+00> : vector<128x32xf32>
    %36 = tpu.matmul %34, %35, %cst_23 {dimension_numbers = #tpu.dot_dimension_numbers<[1], [0], [0], [1], [0, 0, 1, 1], [], []>} : vector<128x32xbf16>, vector<32x32xbf16>, vector<128x32xf32> -> vector<128x32xf32>
    %c0_24 = arith.constant 0 : index
    %c0_25 = arith.constant 0 : index
    %37 = vector.load %arg11[%c0_24, %c0_25] : memref<1x32xf32, #tpu.memory_space<vmem>>, vector<1x32xf32>
    %38 = vector.broadcast %37 : vector<1x32xf32> to vector<128x32xf32>
    %39 = arith.addf %36, %38 : vector<128x32xf32>
    %cst_26 = arith.constant 0.000000e+00 : f32
    %40 = vector.broadcast %cst_26 : f32 to vector<128x32xf32>
    %41 = arith.maximumf %39, %40 : vector<128x32xf32>
    %42 = arith.truncf %41 : vector<128x32xf32> to vector<128x32xbf16>
    %c0_27 = arith.constant 0 : index
    %c0_28 = arith.constant 0 : index
    %43 = vector.load %arg12[%c0_27, %c0_28] : memref<32x32xbf16, #tpu.memory_space<vmem>>, vector<32x32xbf16>
    %cst_29 = arith.constant dense<0.000000e+00> : vector<128x32xf32>
    %44 = tpu.matmul %42, %43, %cst_29 {dimension_numbers = #tpu.dot_dimension_numbers<[1], [0], [0], [1], [0, 0, 1, 1], [], []>} : vector<128x32xbf16>, vector<32x32xbf16>, vector<128x32xf32> -> vector<128x32xf32>
    %c0_30 = arith.constant 0 : index
    %c0_31 = arith.constant 0 : index
    %45 = vector.load %arg13[%c0_30, %c0_31] : memref<1x32xf32, #tpu.memory_space<vmem>>, vector<1x32xf32>
    %46 = vector.broadcast %45 : vector<1x32xf32> to vector<128x32xf32>
    %47 = arith.addf %44, %46 : vector<128x32xf32>
    %48 = arith.addf %47, %33 : vector<128x32xf32>
    %49 = arith.truncf %48 : vector<128x32xf32> to vector<128x32xbf16>
    %c0_32 = arith.constant 0 : index
    %c0_33 = arith.constant 0 : index
    %50 = vector.load %arg14[%c0_32, %c0_33] : memref<32x32xbf16, #tpu.memory_space<vmem>>, vector<32x32xbf16>
    %cst_34 = arith.constant dense<0.000000e+00> : vector<128x32xf32>
    %51 = tpu.matmul %49, %50, %cst_34 {dimension_numbers = #tpu.dot_dimension_numbers<[1], [0], [0], [1], [0, 0, 1, 1], [], []>} : vector<128x32xbf16>, vector<32x32xbf16>, vector<128x32xf32> -> vector<128x32xf32>
    %c0_35 = arith.constant 0 : index
    %c0_36 = arith.constant 0 : index
    %52 = vector.load %arg15[%c0_35, %c0_36] : memref<1x32xf32, #tpu.memory_space<vmem>>, vector<1x32xf32>
    %53 = vector.broadcast %52 : vector<1x32xf32> to vector<128x32xf32>
    %54 = arith.addf %51, %53 : vector<128x32xf32>
    %cst_37 = arith.constant 0.000000e+00 : f32
    %55 = vector.broadcast %cst_37 : f32 to vector<128x32xf32>
    %56 = arith.maximumf %54, %55 : vector<128x32xf32>
    %57 = arith.truncf %56 : vector<128x32xf32> to vector<128x32xbf16>
    %c0_38 = arith.constant 0 : index
    %c0_39 = arith.constant 0 : index
    %58 = vector.load %arg16[%c0_38, %c0_39] : memref<32x128xbf16, #tpu.memory_space<vmem>>, vector<32x128xbf16>
    %cst_40 = arith.constant dense<0.000000e+00> : vector<128x128xf32>
    %59 = tpu.matmul %57, %58, %cst_40 {dimension_numbers = #tpu.dot_dimension_numbers<[1], [0], [0], [1], [0, 0, 1, 1], [], []>} : vector<128x32xbf16>, vector<32x128xbf16>, vector<128x128xf32> -> vector<128x128xf32>
    %c0_41 = arith.constant 0 : index
    %c0_42 = arith.constant 0 : index
    %60 = vector.load %arg17[%c0_41, %c0_42] : memref<1x128xf32, #tpu.memory_space<vmem>>, vector<1x128xf32>
    %61 = vector.broadcast %60 : vector<1x128xf32> to vector<128x128xf32>
    %62 = arith.addf %59, %61 : vector<128x128xf32>
    %cst_43 = arith.constant 0.000000e+00 : f32
    %63 = vector.broadcast %cst_43 : f32 to vector<128x128xf32>
    %64 = arith.maximumf %62, %63 : vector<128x128xf32>
    %c0_44 = arith.constant 0 : index
    %c0_45 = arith.constant 0 : index
    %65 = vector.load %arg18[%c0_44, %c0_45] : memref<128x128xf32, #tpu.memory_space<vmem>>, vector<128x128xf32>
    tpu.vector_store %arg18[%c0_44, %c0_45], %64 {strides = array<i32>} : memref<128x128xf32, #tpu.memory_space<vmem>>, vector<128x128xf32>,
    return
  }
  func.func @transform_0(%arg0: i32) -> (i32, i32) {
    %c0_i32 = arith.constant 0 : i32
    %c0_i32_0 = arith.constant 0 : i32
    return %arg0, %c0_i32 : i32, i32
  }
  func.func @transform_1(%arg0: i32) -> (i32, i32) {
    %c0_i32 = arith.constant 0 : i32
    %c0_i32_0 = arith.constant 0 : i32
    return %arg0, %c0_i32 : i32, i32
  }
  func.func @transform_2(%arg0: i32) -> (i32, i32) {
    %c0_i32 = arith.constant 0 : i32
    %c0_i32_0 = arith.constant 0 : i32
    return %arg0, %c0_i32 : i32, i32
  }
  func.func @transform_3(%arg0: i32) -> (i32, i32) {
    %c0_i32 = arith.constant 0 : i32
    %c0_i32_0 = arith.constant 0 : i32
    %c0_i32_1 = arith.constant 0 : i32
    return %c0_i32, %c0_i32_0 : i32, i32
  }
  func.func @transform_4(%arg0: i32) -> (i32, i32) {
    %c0_i32 = arith.constant 0 : i32
    %c0_i32_0 = arith.constant 0 : i32
    %c0_i32_1 = arith.constant 0 : i32
    return %c0_i32, %c0_i32_0 : i32, i32
  }
  func.func @transform_5(%arg0: i32) -> (i32, i32) {
    %c0_i32 = arith.constant 0 : i32
    %c0_i32_0 = arith.constant 0 : i32
    %c0_i32_1 = arith.constant 0 : i32
    return %c0_i32, %c0_i32_0 : i32, i32
  }
  func.func @transform_6(%arg0: i32) -> (i32, i32) {
    %c0_i32 = arith.constant 0 : i32
    %c0_i32_0 = arith.constant 0 : i32
    %c0_i32_1 = arith.constant 0 : i32
    return %c0_i32, %c0_i32_0 : i32, i32
  }
  func.func @transform_7(%arg0: i32) -> (i32, i32) {
    %c0_i32 = arith.constant 0 : i32
    %c0_i32_0 = arith.constant 0 : i32
    %c0_i32_1 = arith.constant 0 : i32
    return %c0_i32, %c0_i32_0 : i32, i32
  }
  func.func @transform_8(%arg0: i32) -> (i32, i32) {
    %c0_i32 = arith.constant 0 : i32
    %c0_i32_0 = arith.constant 0 : i32
    %c0_i32_1 = arith.constant 0 : i32
    return %c0_i32, %c0_i32_0 : i32, i32
  }
  func.func @transform_9(%arg0: i32) -> (i32, i32) {
    %c0_i32 = arith.constant 0 : i32
    %c0_i32_0 = arith.constant 0 : i32
    %c0_i32_1 = arith.constant 0 : i32
    return %c0_i32, %c0_i32_0 : i32, i32
  }
  func.func @transform_10(%arg0: i32) -> (i32, i32) {
    %c0_i32 = arith.constant 0 : i32
    %c0_i32_0 = arith.constant 0 : i32
    %c0_i32_1 = arith.constant 0 : i32
    return %c0_i32, %c0_i32_0 : i32, i32
  }
  func.func @transform_11(%arg0: i32) -> (i32, i32) {
    %c0_i32 = arith.constant 0 : i32
    %c0_i32_0 = arith.constant 0 : i32
    %c0_i32_1 = arith.constant 0 : i32
    return %c0_i32, %c0_i32_0 : i32, i32
  }
  func.func @transform_12(%arg0: i32) -> (i32, i32) {
    %c0_i32 = arith.constant 0 : i32
    %c0_i32_0 = arith.constant 0 : i32
    %c0_i32_1 = arith.constant 0 : i32
    return %c0_i32, %c0_i32_0 : i32, i32
  }
  func.func @transform_13(%arg0: i32) -> (i32, i32) {
    %c0_i32 = arith.constant 0 : i32
    %c0_i32_0 = arith.constant 0 : i32
    %c0_i32_1 = arith.constant 0 : i32
    return %c0_i32, %c0_i32_0 : i32, i32
  }
  func.func @transform_14(%arg0: i32) -> (i32, i32) {
    %c0_i32 = arith.constant 0 : i32
    %c0_i32_0 = arith.constant 0 : i32
    %c0_i32_1 = arith.constant 0 : i32
    return %c0_i32, %c0_i32_0 : i32, i32
  }
  func.func @transform_15(%arg0: i32) -> (i32, i32) {
    %c0_i32 = arith.constant 0 : i32
    %c0_i32_0 = arith.constant 0 : i32
    %c0_i32_1 = arith.constant 0 : i32
    return %c0_i32, %c0_i32_0 : i32, i32
  }
  func.func @transform_16(%arg0: i32) -> (i32, i32) {
    %c0_i32 = arith.constant 0 : i32
    %c0_i32_0 = arith.constant 0 : i32
    %c0_i32_1 = arith.constant 0 : i32
    return %c0_i32, %c0_i32_0 : i32, i32
  }
  func.func @transform_17(%arg0: i32) -> (i32, i32) {
    %c0_i32 = arith.constant 0 : i32
    %c0_i32_0 = arith.constant 0 : i32
    return %arg0, %c0_i32 : i32, i32
  }
}

</mosaic_0001>

<llo_original>
// kernel: tpu_custom_call.1
$region0: #{tpu_custom_call.1}
  #allocation0 [shape = 'u32[]', space=smem, size = 0x4, offset = 0x4, fixed_abs, tag = 'smem constant byte address 0x4 - core index']
  #allocation1 [shape = 'u32[144,128]{1,0:T(1,128)}', space=vmem, size = 0x12000, scoped, tag = 'internal scratch']
  %s0 = inlined_call_operand.vmem [shape: s32[256,1], index: 0, kind: input, shape index: {}]
  %s1 = inlined_call_operand.vmem [shape: s32[256,1], index: 1, kind: input, shape index: {}]
  %s2 = inlined_call_operand.vmem [shape: f32[256,6], index: 2, kind: input, shape index: {}]
  %s3 = inlined_call_operand.vmem [shape: bf16[24,32], index: 3, kind: input, shape index: {}]
  %s4 = inlined_call_operand.vmem [shape: bf16[24,32], index: 4, kind: input, shape index: {}]
  %s5 = inlined_call_operand.vmem [shape: bf16[6,32], index: 5, kind: input, shape index: {}]
  %s6 = inlined_call_operand.vmem [shape: f32[1,32], index: 6, kind: input, shape index: {}]
  %s7 = inlined_call_operand.vmem [shape: bf16[32,32], index: 7, kind: input, shape index: {}]
  %s8 = inlined_call_operand.vmem [shape: f32[1,32], index: 8, kind: input, shape index: {}]
  %s9 = inlined_call_operand.vmem [shape: bf16[32,32], index: 9, kind: input, shape index: {}]
  %s10 = inlined_call_operand.vmem [shape: f32[1,32], index: 10, kind: input, shape index: {}]
  %s11 = inlined_call_operand.vmem [shape: bf16[32,32], index: 11, kind: input, shape index: {}]
  %s12 = inlined_call_operand.vmem [shape: f32[1,32], index: 12, kind: input, shape index: {}]
  %s13 = inlined_call_operand.vmem [shape: bf16[32,32], index: 13, kind: input, shape index: {}]
  %s14 = inlined_call_operand.vmem [shape: f32[1,32], index: 14, kind: input, shape index: {}]
  %s15 = inlined_call_operand.vmem [shape: bf16[32,128], index: 15, kind: input, shape index: {}]
  %s16 = inlined_call_operand.vmem [shape: f32[1,128], index: 16, kind: input, shape index: {}]
  %s17 = inlined_call_operand.hbm [shape: f32[256,128], index: 17, kind: output, shape index: {}]
  %s18 = sld [smem:[#allocation0]]
  $region101: #{tpu_custom_call.1} parent=0
    _
  %s20 = ssub.s32 1, %s18
  %s21 = scalar_select 0, %s20, %s18
  $region1: #{tpu_custom_call.1} parent=0
    #allocation2 [shape = 'u8[131072]{0}', space=vmem, size = 0x20000, scoped, tag = 'output window, operand 0']
    #allocation3 [shape = 's32[2]{0}', space=sflag, size = 0x8, scoped, tag = 'scoped memory for tpu_custom_call.1']
    %22 = vsyncpa [#allocation3], 0
    %s23 = scalar_lea.sflag [#allocation3], 1
    %24 = vsyncpa %s23, 0
    loop: start=0, step=1, limit=4
    $region2: #{tpu_custom_call.1} parent=1 // loop_pre_header
      _
    $region3: #{tpu_custom_call.1} parent=1 // loop_header
      %s26 = sphi 0, %s30
      %p27 = scmp.ge.s32.totalorder %s26, 4
      %s36 = sphi 0, %s38
      %s39 = sphi 0, %s36
      %s40 = sphi 0, %s39
      %s56 = sphi 0, %s40
      %s62 = sphi 0, %s64
      %s65 = sphi 0, %s62
      %s66 = sphi 0, %s65
      %s82 = sphi 0, %s66
      %s88 = sphi 0, %s90
      %s91 = sphi 0, %s88
      %s92 = sphi 0, %s91
      %s108 = sphi 0, %s92
      %s112 = sphi 0, %s112
      %s114 = sphi 0, %s112
      %s115 = sphi 0, %s114
      %s129 = sphi 0, %s115
      %s133 = sphi 0, %s133
      %s135 = sphi 0, %s133
      %s136 = sphi 0, %s135
      %s150 = sphi 0, %s136
      %s154 = sphi 0, %s154
      %s156 = sphi 0, %s154
      %s157 = sphi 0, %s156
      %s171 = sphi 0, %s157
      %s175 = sphi 0, %s175
      %s177 = sphi 0, %s175
      %s178 = sphi 0, %s177
      %s192 = sphi 0, %s178
      %s196 = sphi 0, %s196
      %s198 = sphi 0, %s196
      %s199 = sphi 0, %s198
      %s213 = sphi 0, %s199
      %s217 = sphi 0, %s217
      %s219 = sphi 0, %s217
      %s220 = sphi 0, %s219
      %s234 = sphi 0, %s220
      %s238 = sphi 0, %s238
      %s240 = sphi 0, %s238
      %s241 = sphi 0, %s240
      %s255 = sphi 0, %s241
      %s259 = sphi 0, %s259
      %s261 = sphi 0, %s259
      %s262 = sphi 0, %s261
      %s276 = sphi 0, %s262
      %s280 = sphi 0, %s280
      %s282 = sphi 0, %s280
      %s283 = sphi 0, %s282
      %s297 = sphi 0, %s283
      %s301 = sphi 0, %s301
      %s303 = sphi 0, %s301
      %s304 = sphi 0, %s303
      %s318 = sphi 0, %s304
      %s322 = sphi 0, %s322
      %s324 = sphi 0, %s322
      %s325 = sphi 0, %s324
      %s339 = sphi 0, %s325
      %s343 = sphi 0, %s343
      %s345 = sphi 0, %s343
      %s346 = sphi 0, %s345
      %s360 = sphi 0, %s346
      %s364 = sphi 0, %s364
      %s366 = sphi 0, %s364
      %s367 = sphi 0, %s366
      %s381 = sphi 0, %s367
      %s385 = sphi 0, %s385
      %s387 = sphi 0, %s385
      %s388 = sphi 0, %s387
      %s402 = sphi 0, %s388
      %s408 = sphi 0, %s410
      %s411 = sphi 0, %s408
      %s412 = sphi 0, %s411
      %s428 = sphi 0, %s412
    $region4: #{tpu_custom_call.1} parent=1 // loop_header_branch
      %29 = sbr.rel (%p27) target = $region8
    $region5: #{tpu_custom_call.1} parent=1 // loop_body
      %s31 = ssub.s32 %s26, 1
      %s32 = ssub.s32 %s26, 2
      %s33 = sadd.s32 %s26, 1
      %s34 = ssub.s32 %s26, %s33
      %p35 = scmp.eq.s32.totalorder %s34, 0
      %s37 = sadd.s32 %s36, 1
      %s38 = scalar_select %p35, %s36, %s37
      %p41 = pneg %p35
      %p42 = scmp.eq.s32.totalorder %s26, 1
      %p43 = por %p41, %p42
      %p44 = scmp.ne.s32.totalorder %s36, %s39
      %p45 = scmp.eq.s32.totalorder %s26, 0
      %p46 = por %p44, %p45
      %p47 = scmp.ne.s32.totalorder %s36, %s39
      %p48 = scmp.eq.s32.totalorder %s31, 1
      %p49 = por %p47, %p48
      %p50 = scmp.ne.s32.totalorder %s39, %s40
      %p51 = scmp.eq.s32.totalorder %s31, 0
      %p52 = por %p50, %p51
      %p53 = scmp.ne.s32.totalorder %s39, %s40
      %p54 = scmp.eq.s32.totalorder %s32, 1
      %p55 = por %p53, %p54
      %p57 = scmp.ne.s32.totalorder %s40, %s56
      %p58 = scmp.eq.s32.totalorder %s32, 0
      %p59 = por %p57, %p58
      %s60 = ssub.s32 %s26, %s33
      %p61 = scmp.eq.s32.totalorder %s60, 0
      %s63 = sadd.s32 %s62, 1
      %s64 = scalar_select %p61, %s62, %s63
      %p67 = pneg %p61
      %p68 = scmp.eq.s32.totalorder %s26, 1
      %p69 = por %p67, %p68
      %p70 = scmp.ne.s32.totalorder %s62, %s65
      %p71 = scmp.eq.s32.totalorder %s26, 0
      %p72 = por %p70, %p71
      %p73 = scmp.ne.s32.totalorder %s62, %s65
      %p74 = scmp.eq.s32.totalorder %s31, 1
      %p75 = por %p73, %p74
      %p76 = scmp.ne.s32.totalorder %s65, %s66
      %p77 = scmp.eq.s32.totalorder %s31, 0
      %p78 = por %p76, %p77
      %p79 = scmp.ne.s32.totalorder %s65, %s66
      %p80 = scmp.eq.s32.totalorder %s32, 1
      %p81 = por %p79, %p80
      %p83 = scmp.ne.s32.totalorder %s66, %s82
      %p84 = scmp.eq.s32.totalorder %s32, 0
      %p85 = por %p83, %p84
      %s86 = ssub.s32 %s26, %s33
      %p87 = scmp.eq.s32.totalorder %s86, 0
      %s89 = sadd.s32 %s88, 1
      %s90 = scalar_select %p87, %s88, %s89
      %p93 = pneg %p87
      %p94 = scmp.eq.s32.totalorder %s26, 1
      %p95 = por %p93, %p94
      %p96 = scmp.ne.s32.totalorder %s88, %s91
      %p97 = scmp.eq.s32.totalorder %s26, 0
      %p98 = por %p96, %p97
      %p99 = scmp.ne.s32.totalorder %s88, %s91
      %p100 = scmp.eq.s32.totalorder %s31, 1
      %p101 = por %p99, %p100
      %p102 = scmp.ne.s32.totalorder %s91, %s92
      %p103 = scmp.eq.s32.totalorder %s31, 0
      %p104 = por %p102, %p103
      %p105 = scmp.ne.s32.totalorder %s91, %s92
      %p106 = scmp.eq.s32.totalorder %s32, 1
      %p107 = por %p105, %p106
      %p109 = scmp.ne.s32.totalorder %s92, %s108
      %p110 = scmp.eq.s32.totalorder %s32, 0
      %p111 = por %p109, %p110
      %s113 = sadd.s32 %s112, 1
      %p116 = scmp.eq.s32.totalorder %s26, 1
      %p117 = scmp.ne.s32.totalorder %s112, %s114
      %p118 = scmp.eq.s32.totalorder %s26, 0
      %p119 = por %p117, %p118
      %p120 = scmp.ne.s32.totalorder %s112, %s114
      %p121 = scmp.eq.s32.totalorder %s31, 1
      %p122 = por %p120, %p121
      %p123 = scmp.ne.s32.totalorder %s114, %s115
      %p124 = scmp.eq.s32.totalorder %s31, 0
      %p125 = por %p123, %p124
      %p126 = scmp.ne.s32.totalorder %s114, %s115
      %p127 = scmp.eq.s32.totalorder %s32, 1
      %p128 = por %p126, %p127
      %p130 = scmp.ne.s32.totalorder %s115, %s129
      %p131 = scmp.eq.s32.totalorder %s32, 0
      %p132 = por %p130, %p131
      %s134 = sadd.s32 %s133, 1
      %p137 = scmp.eq.s32.totalorder %s26, 1
      %p138 = scmp.ne.s32.totalorder %s133, %s135
      %p139 = scmp.eq.s32.totalorder %s26, 0
      %p140 = por %p138, %p139
      %p141 = scmp.ne.s32.totalorder %s133, %s135
      %p142 = scmp.eq.s32.totalorder %s31, 1
      %p143 = por %p141, %p142
      %p144 = scmp.ne.s32.totalorder %s135, %s136
      %p145 = scmp.eq.s32.totalorder %s31, 0
      %p146 = por %p144, %p145
      %p147 = scmp.ne.s32.totalorder %s135, %s136
      %p148 = scmp.eq.s32.totalorder %s32, 1
      %p149 = por %p147, %p148
      %p151 = scmp.ne.s32.totalorder %s136, %s150
      %p152 = scmp.eq.s32.totalorder %s32, 0
      %p153 = por %p151, %p152
      %s155 = sadd.s32 %s154, 1
      %p158 = scmp.eq.s32.totalorder %s26, 1
      %p159 = scmp.ne.s32.totalorder %s154, %s156
      %p160 = scmp.eq.s32.totalorder %s26, 0
      %p161 = por %p159, %p160
      %p162 = scmp.ne.s32.totalorder %s154, %s156
      %p163 = scmp.eq.s32.totalorder %s31, 1
      %p164 = por %p162, %p163
      %p165 = scmp.ne.s32.totalorder %s156, %s157
      %p166 = scmp.eq.s32.totalorder %s31, 0
      %p167 = por %p165, %p166
      %p168 = scmp.ne.s32.totalorder %s156, %s157
      %p169 = scmp.eq.s32.totalorder %s32, 1
      %p170 = por %p168, %p169
      %p172 = scmp.ne.s32.totalorder %s157, %s171
      %p173 = scmp.eq.s32.totalorder %s32, 0
      %p174 = por %p172, %p173
      %s176 = sadd.s32 %s175, 1
      %p179 = scmp.eq.s32.totalorder %s26, 1
      %p180 = scmp.ne.s32.totalorder %s175, %s177
      %p181 = scmp.eq.s32.totalorder %s26, 0
      %p182 = por %p180, %p181
      %p183 = scmp.ne.s32.totalorder %s175, %s177
      %p184 = scmp.eq.s32.totalorder %s31, 1
      %p185 = por %p183, %p184
      %p186 = scmp.ne.s32.totalorder %s177, %s178
      %p187 = scmp.eq.s32.totalorder %s31, 0
      %p188 = por %p186, %p187
      %p189 = scmp.ne.s32.totalorder %s177, %s178
      %p190 = scmp.eq.s32.totalorder %s32, 1
      %p191 = por %p189, %p190
      %p193 = scmp.ne.s32.totalorder %s178, %s192
      %p194 = scmp.eq.s32.totalorder %s32, 0
      %p195 = por %p193, %p194
      %s197 = sadd.s32 %s196, 1
      %p200 = scmp.eq.s32.totalorder %s26, 1
      %p201 = scmp.ne.s32.totalorder %s196, %s198
      %p202 = scmp.eq.s32.totalorder %s26, 0
      %p203 = por %p201, %p202
      %p204 = scmp.ne.s32.totalorder %s196, %s198
      %p205 = scmp.eq.s32.totalorder %s31, 1
      %p206 = por %p204, %p205
      %p207 = scmp.ne.s32.totalorder %s198, %s199
      %p208 = scmp.eq.s32.totalorder %s31, 0
      %p209 = por %p207, %p208
      %p210 = scmp.ne.s32.totalorder %s198, %s199
      %p211 = scmp.eq.s32.totalorder %s32, 1
      %p212 = por %p210, %p211
      %p214 = scmp.ne.s32.totalorder %s199, %s213
      %p215 = scmp.eq.s32.totalorder %s32, 0
      %p216 = por %p214, %p215
      %s218 = sadd.s32 %s217, 1
      %p221 = scmp.eq.s32.totalorder %s26, 1
      %p222 = scmp.ne.s32.totalorder %s217, %s219
      %p223 = scmp.eq.s32.totalorder %s26, 0
      %p224 = por %p222, %p223
      %p225 = scmp.ne.s32.totalorder %s217, %s219
      %p226 = scmp.eq.s32.totalorder %s31, 1
      %p227 = por %p225, %p226
      %p228 = scmp.ne.s32.totalorder %s219, %s220
      %p229 = scmp.eq.s32.totalorder %s31, 0
      %p230 = por %p228, %p229
      %p231 = scmp.ne.s32.totalorder %s219, %s220
      %p232 = scmp.eq.s32.totalorder %s32, 1
      %p233 = por %p231, %p232
      %p235 = scmp.ne.s32.totalorder %s220, %s234
      %p236 = scmp.eq.s32.totalorder %s32, 0
      %p237 = por %p235, %p236
      %s239 = sadd.s32 %s238, 1
      %p242 = scmp.eq.s32.totalorder %s26, 1
      %p243 = scmp.ne.s32.totalorder %s238, %s240
      %p244 = scmp.eq.s32.totalorder %s26, 0
      %p245 = por %p243, %p244
      %p246 = scmp.ne.s32.totalorder %s238, %s240
      %p247 = scmp.eq.s32.totalorder %s31, 1
      %p248 = por %p246, %p247
      %p249 = scmp.ne.s32.totalorder %s240, %s241
      %p250 = scmp.eq.s32.totalorder %s31, 0
      %p251 = por %p249, %p250
      %p252 = scmp.ne.s32.totalorder %s240, %s241
      %p253 = scmp.eq.s32.totalorder %s32, 1
      %p254 = por %p252, %p253
      %p256 = scmp.ne.s32.totalorder %s241, %s255
      %p257 = scmp.eq.s32.totalorder %s32, 0
      %p258 = por %p256, %p257
      %s260 = sadd.s32 %s259, 1
      %p263 = scmp.eq.s32.totalorder %s26, 1
      %p264 = scmp.ne.s32.totalorder %s259, %s261
      %p265 = scmp.eq.s32.totalorder %s26, 0
      %p266 = por %p264, %p265
      %p267 = scmp.ne.s32.totalorder %s259, %s261
      %p268 = scmp.eq.s32.totalorder %s31, 1
      %p269 = por %p267, %p268
      %p270 = scmp.ne.s32.totalorder %s261, %s262
      %p271 = scmp.eq.s32.totalorder %s31, 0
      %p272 = por %p270, %p271
      %p273 = scmp.ne.s32.totalorder %s261, %s262
      %p274 = scmp.eq.s32.totalorder %s32, 1
      %p275 = por %p273, %p274
      %p277 = scmp.ne.s32.totalorder %s262, %s276
      %p278 = scmp.eq.s32.totalorder %s32, 0
      %p279 = por %p277, %p278
      %s281 = sadd.s32 %s280, 1
      %p284 = scmp.eq.s32.totalorder %s26, 1
      %p285 = scmp.ne.s32.totalorder %s280, %s282
      %p286 = scmp.eq.s32.totalorder %s26, 0
      %p287 = por %p285, %p286
      %p288 = scmp.ne.s32.totalorder %s280, %s282
      %p289 = scmp.eq.s32.totalorder %s31, 1
      %p290 = por %p288, %p289
      %p291 = scmp.ne.s32.totalorder %s282, %s283
      %p292 = scmp.eq.s32.totalorder %s31, 0
      %p293 = por %p291, %p292
      %p294 = scmp.ne.s32.totalorder %s282, %s283
      %p295 = scmp.eq.s32.totalorder %s32, 1
      %p296 = por %p294, %p295
      %p298 = scmp.ne.s32.totalorder %s283, %s297
      %p299 = scmp.eq.s32.totalorder %s32, 0
      %p300 = por %p298, %p299
      %s302 = sadd.s32 %s301, 1
      %p305 = scmp.eq.s32.totalorder %s26, 1
      %p306 = scmp.ne.s32.totalorder %s301, %s303
      %p307 = scmp.eq.s32.totalorder %s26, 0
      %p308 = por %p306, %p307
      %p309 = scmp.ne.s32.totalorder %s301, %s303
      %p310 = scmp.eq.s32.totalorder %s31, 1
      %p311 = por %p309, %p310
      %p312 = scmp.ne.s32.totalorder %s303, %s304
      %p313 = scmp.eq.s32.totalorder %s31, 0
      %p314 = por %p312, %p313
      %p315 = scmp.ne.s32.totalorder %s303, %s304
      %p316 = scmp.eq.s32.totalorder %s32, 1
      %p317 = por %p315, %p316
      %p319 = scmp.ne.s32.totalorder %s304, %s318
      %p320 = scmp.eq.s32.totalorder %s32, 0
      %p321 = por %p319, %p320
      %s323 = sadd.s32 %s322, 1
      %p326 = scmp.eq.s32.totalorder %s26, 1
      %p327 = scmp.ne.s32.totalorder %s322, %s324
      %p328 = scmp.eq.s32.totalorder %s26, 0
      %p329 = por %p327, %p328
      %p330 = scmp.ne.s32.totalorder %s322, %s324
      %p331 = scmp.eq.s32.totalorder %s31, 1
      %p332 = por %p330, %p331
      %p333 = scmp.ne.s32.totalorder %s324, %s325
      %p334 = scmp.eq.s32.totalorder %s31, 0
      %p335 = por %p333, %p334
      %p336 = scmp.ne.s32.totalorder %s324, %s325
      %p337 = scmp.eq.s32.totalorder %s32, 1
      %p338 = por %p336, %p337
      %p340 = scmp.ne.s32.totalorder %s325, %s339
      %p341 = scmp.eq.s32.totalorder %s32, 0
      %p342 = por %p340, %p341
      %s344 = sadd.s32 %s343, 1
      %p347 = scmp.eq.s32.totalorder %s26, 1
      %p348 = scmp.ne.s32.totalorder %s343, %s345
      %p349 = scmp.eq.s32.totalorder %s26, 0
      %p350 = por %p348, %p349
      %p351 = scmp.ne.s32.totalorder %s343, %s345
      %p352 = scmp.eq.s32.totalorder %s31, 1
      %p353 = por %p351, %p352
      %p354 = scmp.ne.s32.totalorder %s345, %s346
      %p355 = scmp.eq.s32.totalorder %s31, 0
      %p356 = por %p354, %p355
      %p357 = scmp.ne.s32.totalorder %s345, %s346
      %p358 = scmp.eq.s32.totalorder %s32, 1
      %p359 = por %p357, %p358
      %p361 = scmp.ne.s32.totalorder %s346, %s360
      %p362 = scmp.eq.s32.totalorder %s32, 0
      %p363 = por %p361, %p362
      %s365 = sadd.s32 %s364, 1
      %p368 = scmp.eq.s32.totalorder %s26, 1
      %p369 = scmp.ne.s32.totalorder %s364, %s366
      %p370 = scmp.eq.s32.totalorder %s26, 0
      %p371 = por %p369, %p370
      %p372 = scmp.ne.s32.totalorder %s364, %s366
      %p373 = scmp.eq.s32.totalorder %s31, 1
      %p374 = por %p372, %p373
      %p375 = scmp.ne.s32.totalorder %s366, %s367
      %p376 = scmp.eq.s32.totalorder %s31, 0
      %p377 = por %p375, %p376
      %p378 = scmp.ne.s32.totalorder %s366, %s367
      %p379 = scmp.eq.s32.totalorder %s32, 1
      %p380 = por %p378, %p379
      %p382 = scmp.ne.s32.totalorder %s367, %s381
      %p383 = scmp.eq.s32.totalorder %s32, 0
      %p384 = por %p382, %p383
      %s386 = sadd.s32 %s385, 1
      %p389 = scmp.eq.s32.totalorder %s26, 1
      %p390 = scmp.ne.s32.totalorder %s385, %s387
      %p391 = scmp.eq.s32.totalorder %s26, 0
      %p392 = por %p390, %p391
      %p393 = scmp.ne.s32.totalorder %s385, %s387
      %p394 = scmp.eq.s32.totalorder %s31, 1
      %p395 = por %p393, %p394
      %p396 = scmp.ne.s32.totalorder %s387, %s388
      %p397 = scmp.eq.s32.totalorder %s31, 0
      %p398 = por %p396, %p397
      %p399 = scmp.ne.s32.totalorder %s387, %s388
      %p400 = scmp.eq.s32.totalorder %s32, 1
      %p401 = por %p399, %p400
      %p403 = scmp.ne.s32.totalorder %s388, %s402
      %p404 = scmp.eq.s32.totalorder %s32, 0
      %p405 = por %p403, %p404
      %s406 = ssub.s32 %s26, %s33
      %p407 = scmp.eq.s32.totalorder %s406, 0
      %s409 = sadd.s32 %s408, 1
      %s410 = scalar_select %p407, %s408, %s409
      %p413 = pneg %p407
      %p414 = scmp.eq.s32.totalorder %s26, 1
      %p415 = por %p413, %p414
      %p416 = scmp.ne.s32.totalorder %s408, %s411
      %p417 = scmp.eq.s32.totalorder %s26, 0
      %p418 = por %p416, %p417
      %p419 = scmp.ne.s32.totalorder %s408, %s411
      %p420 = scmp.eq.s32.totalorder %s31, 1
      %p421 = por %p419, %p420
      %p422 = scmp.ne.s32.totalorder %s411, %s412
      %p423 = scmp.eq.s32.totalorder %s31, 0
      %p424 = por %p422, %p423
      %p425 = scmp.ne.s32.totalorder %s411, %s412
      %p426 = scmp.eq.s32.totalorder %s32, 1
      %p427 = por %p425, %p426
      %p429 = scmp.ne.s32.totalorder %s412, %s428
      %p430 = scmp.eq.s32.totalorder %s32, 0
      %p431 = por %p429, %p430
      %p432 = scmp.le.s32.totalorder 1, %s26
      %p433 = scmp.lt.s32.totalorder %s26, 3
      %p434 = pnand %p432, %p433
      %p435 = pneg %p434
      // Predicated region
      $region9: #{tpu_custom_call.1} parent=5 // pred_check
        _
      $region10: #{tpu_custom_call.1} parent=5 // pred_check_branch
        %437 = sbr.rel (%p434) target = $region12
      $region11: #{tpu_custom_call.1} parent=5 // pred_region
        %s438 = ssub.s32 %s26, 1
        // Predicated region
        $region13: #{tpu_custom_call.1} parent=11 // pred_check
          %p439 = pneg %p125
        $region14: #{tpu_custom_call.1} parent=11 // pred_check_branch
          %441 = sbr.rel (%p439) target = $region16
        $region15: #{tpu_custom_call.1} parent=11 // pred_region
          _
        $region16: #{tpu_custom_call.1} parent=11 // pred_fallthru
          _
        // Predicated region
        $region17: #{tpu_custom_call.1} parent=11 // pred_check
          %p442 = pneg %p146
        $region18: #{tpu_custom_call.1} parent=11 // pred_check_branch
          %444 = sbr.rel (%p442) target = $region20
        $region19: #{tpu_custom_call.1} parent=11 // pred_region
          _
        $region20: #{tpu_custom_call.1} parent=11 // pred_fallthru
          _
        // Predicated region
        $region21: #{tpu_custom_call.1} parent=11 // pred_check
          %p445 = pneg %p167
        $region22: #{tpu_custom_call.1} parent=11 // pred_check_branch
          %447 = sbr.rel (%p445) target = $region24
        $region23: #{tpu_custom_call.1} parent=11 // pred_region
          _
        $region24: #{tpu_custom_call.1} parent=11 // pred_fallthru
          _
        // Predicated region
        $region25: #{tpu_custom_call.1} parent=11 // pred_check
          %p448 = pneg %p188
        $region26: #{tpu_custom_call.1} parent=11 // pred_check_branch
          %450 = sbr.rel (%p448) target = $region28
        $region27: #{tpu_custom_call.1} parent=11 // pred_region
          _
        $region28: #{tpu_custom_call.1} parent=11 // pred_fallthru
          _
        // Predicated region
        $region29: #{tpu_custom_call.1} parent=11 // pred_check
          %p451 = pneg %p209
        $region30: #{tpu_custom_call.1} parent=11 // pred_check_branch
          %453 = sbr.rel (%p451) target = $region32
        $region31: #{tpu_custom_call.1} parent=11 // pred_region
          _
        $region32: #{tpu_custom_call.1} parent=11 // pred_fallthru
          _
        // Predicated region
        $region33: #{tpu_custom_call.1} parent=11 // pred_check
          %p454 = pneg %p230
        $region34: #{tpu_custom_call.1} parent=11 // pred_check_branch
          %456 = sbr.rel (%p454) target = $region36
        $region35: #{tpu_custom_call.1} parent=11 // pred_region
          _
        $region36: #{tpu_custom_call.1} parent=11 // pred_fallthru
          _
        // Predicated region
        $region37: #{tpu_custom_call.1} parent=11 // pred_check
          %p457 = pneg %p251
        $region38: #{tpu_custom_call.1} parent=11 // pred_check_branch
          %459 = sbr.rel (%p457) target = $region40
        $region39: #{tpu_custom_call.1} parent=11 // pred_region
          _
        $region40: #{tpu_custom_call.1} parent=11 // pred_fallthru
          _
        // Predicated region
        $region41: #{tpu_custom_call.1} parent=11 // pred_check
          %p460 = pneg %p272
        $region42: #{tpu_custom_call.1} parent=11 // pred_check_branch
          %462 = sbr.rel (%p460) target = $region44
        $region43: #{tpu_custom_call.1} parent=11 // pred_region
          _
        $region44: #{tpu_custom_call.1} parent=11 // pred_fallthru
          _
        // Predicated region
        $region45: #{tpu_custom_call.1} parent=11 // pred_check
          %p463 = pneg %p293
        $region46: #{tpu_custom_call.1} parent=11 // pred_check_branch
          %465 = sbr.rel (%p463) target = $region48
        $region47: #{tpu_custom_call.1} parent=11 // pred_region
          _
        $region48: #{tpu_custom_call.1} parent=11 // pred_fallthru
          _
        // Predicated region
        $region49: #{tpu_custom_call.1} parent=11 // pred_check
          %p466 = pneg %p314
        $region50: #{tpu_custom_call.1} parent=11 // pred_check_branch
          %468 = sbr.rel (%p466) target = $region52
        $region51: #{tpu_custom_call.1} parent=11 // pred_region
          _
        $region52: #{tpu_custom_call.1} parent=11 // pred_fallthru
          _
        // Predicated region
        $region53: #{tpu_custom_call.1} parent=11 // pred_check
          %p469 = pneg %p335
        $region54: #{tpu_custom_call.1} parent=11 // pred_check_branch
          %471 = sbr.rel (%p469) target = $region56
        $region55: #{tpu_custom_call.1} parent=11 // pred_region
          _
        $region56: #{tpu_custom_call.1} parent=11 // pred_fallthru
          _
        // Predicated region
        $region57: #{tpu_custom_call.1} parent=11 // pred_check
          %p472 = pneg %p356
        $region58: #{tpu_custom_call.1} parent=11 // pred_check_branch
          %474 = sbr.rel (%p472) target = $region60
        $region59: #{tpu_custom_call.1} parent=11 // pred_region
          _
        $region60: #{tpu_custom_call.1} parent=11 // pred_fallthru
          _
        // Predicated region
        $region61: #{tpu_custom_call.1} parent=11 // pred_check
          %p475 = pneg %p377
        $region62: #{tpu_custom_call.1} parent=11 // pred_check_branch
          %477 = sbr.rel (%p475) target = $region64
        $region63: #{tpu_custom_call.1} parent=11 // pred_region
          _
        $region64: #{tpu_custom_call.1} parent=11 // pred_fallthru
          _
        // Predicated region
        $region65: #{tpu_custom_call.1} parent=11 // pred_check
          %p478 = pneg %p398
        $region66: #{tpu_custom_call.1} parent=11 // pred_check_branch
          %480 = sbr.rel (%p478) target = $region68
        $region67: #{tpu_custom_call.1} parent=11 // pred_region
          _
        $region68: #{tpu_custom_call.1} parent=11 // pred_fallthru
          _
      $region12: #{tpu_custom_call.1} parent=5 // pred_fallthru
        _
      %p481 = scmp.lt.s32.totalorder %s26, 2
      // Predicated region
      $region69: #{tpu_custom_call.1} parent=5 // pred_check
        %p482 = pneg %p481
      $region70: #{tpu_custom_call.1} parent=5 // pred_check_branch
        %484 = sbr.rel (%p482) target = $region72
      $region71: #{tpu_custom_call.1} parent=5 // pred_region
        // Predicated region
        $region73: #{tpu_custom_call.1} parent=71 // pred_check
          %p485 = pneg %p46
        $region74: #{tpu_custom_call.1} parent=71 // pred_check_branch
          %487 = sbr.rel (%p485) target = $region76
        $region75: #{tpu_custom_call.1} parent=71 // pred_region
          %s488 = smul.u32 16, %s26
          %p489 = scmp.lt.s32.totalorder %s488, 31
          %s490 = scalar_select %p489, %s488, 31
          %s491 = smul.addr %s490, 8
          %s492 = scalar_lea.vmem %s0, %s491
          %s493 = smul.u32 16, %s26
        $region76: #{tpu_custom_call.1} parent=71 // pred_fallthru
          _
        // Predicated region
        $region77: #{tpu_custom_call.1} parent=71 // pred_check
          %p494 = pneg %p72
        $region78: #{tpu_custom_call.1} parent=71 // pred_check_branch
          %496 = sbr.rel (%p494) target = $region80
        $region79: #{tpu_custom_call.1} parent=71 // pred_region
          %s497 = smul.u32 16, %s26
          %p498 = scmp.lt.s32.totalorder %s497, 31
          %s499 = scalar_select %p498, %s497, 31
          %s500 = smul.addr %s499, 8
          %s501 = scalar_lea.vmem %s1, %s500
          %s502 = smul.u32 16, %s26
        $region80: #{tpu_custom_call.1} parent=71 // pred_fallthru
          _
        // Predicated region
        $region81: #{tpu_custom_call.1} parent=71 // pred_check
          %p503 = pneg %p98
        $region82: #{tpu_custom_call.1} parent=71 // pred_check_branch
          %505 = sbr.rel (%p503) target = $region84
        $region83: #{tpu_custom_call.1} parent=71 // pred_region
          %s506 = smul.u32 16, %s26
          %p507 = scmp.lt.s32.totalorder %s506, 31
          %s508 = scalar_select %p507, %s506, 31
          %s509 = smul.addr %s508, 8
          %s510 = scalar_lea.vmem %s2, %s509
          %s511 = smul.u32 16, %s26
        $region84: #{tpu_custom_call.1} parent=71 // pred_fallthru
          _
      $region72: #{tpu_custom_call.1} parent=5 // pred_fallthru
        _
      %p512 = scmp.le.s32.totalorder 1, %s26
      %p513 = scmp.lt.s32.totalorder %s26, 3
      %p514 = pnand %p512, %p513
      %p515 = pneg %p514
      // Predicated region
      $region85: #{tpu_custom_call.1} parent=5 // pred_check
        _
      $region86: #{tpu_custom_call.1} parent=5 // pred_check_branch
        %517 = sbr.rel (%p514) target = $region88
      $region87: #{tpu_custom_call.1} parent=5 // pred_region
        %s518 = ssub.s32 %s26, 1
        %s519 = smul.u32 16, %s31
        %p520 = scmp.lt.s32.totalorder %s519, 31
        %s521 = scalar_select %p520, %s519, 31
        %s522 = smul.addr %s521, 8
        %s523 = scalar_lea.vmem %s0, %s522
        %p524 = pneg %p52
        %p525 = pneg %p49
        %s526 = smul.u32 16, %s31
        %p527 = scmp.lt.s32.totalorder %s526, 31
        %s528 = scalar_select %p527, %s526, 31
        %s529 = smul.addr %s528, 8
        %s530 = scalar_lea.vmem %s1, %s529
        %p531 = pneg %p78
        %p532 = pneg %p75
        %s533 = smul.u32 16, %s31
        %p534 = scmp.lt.s32.totalorder %s533, 31
        %s535 = scalar_select %p534, %s533, 31
        %s536 = smul.addr %s535, 8
        %s537 = scalar_lea.vmem %s2, %s536
        %p538 = pneg %p104
        %p539 = pneg %p101
        %p540 = pneg %p125
        %p541 = pneg %p122
        %p542 = pneg %p146
        %p543 = pneg %p143
        %p544 = pneg %p167
        %p545 = pneg %p164
        %p546 = pneg %p188
        %p547 = pneg %p185
        %p548 = pneg %p209
        %p549 = pneg %p206
        %p550 = pneg %p230
        %p551 = pneg %p227
        %p552 = pneg %p251
        %p553 = pneg %p248
        %p554 = pneg %p272
        %p555 = pneg %p269
        %p556 = pneg %p293
        %p557 = pneg %p290
        %p558 = pneg %p314
        %p559 = pneg %p311
        %p560 = pneg %p335
        %p561 = pneg %p332
        %p562 = pneg %p356
        %p563 = pneg %p353
        %p564 = pneg %p377
        %p565 = pneg %p374
        %p566 = pneg %p398
        %p567 = pneg %p395
        %p568 = pneg %p424
        %p569 = pneg %p421
        %s570 = sand.u32 %s411, 1
        %s571 = scalar_lea.sflag [#allocation3], %s570
        %s572 = sand.u32 %s411, 1
        %s573 = smul.addr %s572, 128
        %s574 = scalar_lea.vmem [#allocation2], %s573
        %s575 = smul.u32 16, %s31
        %p576 = scmp.lt.s32.totalorder %s575, 31
        %s577 = scalar_select %p576, %s575, 31
        %s578 = smul.addr %s577, 8
        %s579 = scalar_lea.vmem %s0, %s578
        %s580 = smul.u32 16, %s31
        %s581 = smul.u32 16, %s31
        %p582 = scmp.lt.s32.totalorder %s581, 31
        %s583 = scalar_select %p582, %s581, 31
        %s584 = smul.addr %s583, 8
        %s585 = scalar_lea.vmem %s1, %s584
        %s586 = smul.u32 16, %s31
        %s587 = smul.u32 16, %s31
        %p588 = scmp.lt.s32.totalorder %s587, 31
        %s589 = scalar_select %p588, %s587, 31
        %s590 = smul.addr %s589, 8
        %s591 = scalar_lea.vmem %s2, %s590
        %s592 = smul.u32 16, %s31
        %s593 = smul.u32 16, %s31
        %v595 = vlaneseq
        %v596 = vand.u32 %v595, 127
        %v597 = vld [vmem:[%s579] sm:$0xff]
        %v598 = vld [vmem:[%s579 + $0x8] sm:$0xff]
        %v599 = vld [vmem:[%s579 + $0x10] sm:$0xff]
        %v600 = vld [vmem:[%s579 + $0x18] sm:$0xff]
        %v601 = vld [vmem:[%s579 + $0x20] sm:$0xff]
        %v602 = vld [vmem:[%s579 + $0x28] sm:$0xff]
        %v603 = vld [vmem:[%s579 + $0x30] sm:$0xff]
        %v604 = vld [vmem:[%s579 + $0x38] sm:$0xff]
        %v605 = vld [vmem:[%s579 + $0x40] sm:$0xff]
        %v606 = vld [vmem:[%s579 + $0x48] sm:$0xff]
        %v607 = vld [vmem:[%s579 + $0x50] sm:$0xff]
        %v608 = vld [vmem:[%s579 + $0x58] sm:$0xff]
        %v609 = vld [vmem:[%s579 + $0x60] sm:$0xff]
        %v610 = vld [vmem:[%s579 + $0x68] sm:$0xff]
        %v611 = vld [vmem:[%s579 + $0x70] sm:$0xff]
        %v612 = vld [vmem:[%s579 + $0x78] sm:$0xff]
        %613 = vset.pattern.permute.xlu0 0
        %614 = vperm.xlu0 %613, %v597
        %v615 = vpop.permute.xlu0 %614
        %616 = vset.pattern.permute.xlu0 0
        %617 = vperm.xlu0 %616, %v598
        %v618 = vpop.permute.xlu0 %617
        %619 = vset.pattern.permute.xlu0 0
        %620 = vperm.xlu0 %619, %v599
        %v621 = vpop.permute.xlu0 %620
        %622 = vset.pattern.permute.xlu0 0
        %623 = vperm.xlu0 %622, %v600
        %v624 = vpop.permute.xlu0 %623
        %625 = vset.pattern.permute.xlu0 0
        %626 = vperm.xlu0 %625, %v601
        %v627 = vpop.permute.xlu0 %626
        %628 = vset.pattern.permute.xlu0 0
        %629 = vperm.xlu0 %628, %v602
        %v630 = vpop.permute.xlu0 %629
        %631 = vset.pattern.permute.xlu0 0
        %632 = vperm.xlu0 %631, %v603
        %v633 = vpop.permute.xlu0 %632
        %634 = vset.pattern.permute.xlu0 0
        %635 = vperm.xlu0 %634, %v604
        %v636 = vpop.permute.xlu0 %635
        %637 = vset.pattern.permute.xlu0 0
        %638 = vperm.xlu0 %637, %v605
        %v639 = vpop.permute.xlu0 %638
        %640 = vset.pattern.permute.xlu0 0
        %641 = vperm.xlu0 %640, %v606
        %v642 = vpop.permute.xlu0 %641
        %643 = vset.pattern.permute.xlu0 0
        %644 = vperm.xlu0 %643, %v607
        %v645 = vpop.permute.xlu0 %644
        %646 = vset.pattern.permute.xlu0 0
        %647 = vperm.xlu0 %646, %v608
        %v648 = vpop.permute.xlu0 %647
        %649 = vset.pattern.permute.xlu0 0
        %650 = vperm.xlu0 %649, %v609
        %v651 = vpop.permute.xlu0 %650
        %652 = vset.pattern.permute.xlu0 0
        %653 = vperm.xlu0 %652, %v610
        %v654 = vpop.permute.xlu0 %653
        %655 = vset.pattern.permute.xlu0 0
        %656 = vperm.xlu0 %655, %v611
        %v657 = vpop.permute.xlu0 %656
        %658 = vset.pattern.permute.xlu0 0
        %659 = vperm.xlu0 %658, %v612
        %v660 = vpop.permute.xlu0 %659
        %vm661 = vcmp.eq.s32.totalorder %v596, %v615
        %vm662 = vcmp.eq.s32.totalorder %v596, %v618
        %vm663 = vcmp.eq.s32.totalorder %v596, %v621
        %vm664 = vcmp.eq.s32.totalorder %v596, %v624
        %vm665 = vcmp.eq.s32.totalorder %v596, %v627
        %vm666 = vcmp.eq.s32.totalorder %v596, %v630
        %vm667 = vcmp.eq.s32.totalorder %v596, %v633
        %vm668 = vcmp.eq.s32.totalorder %v596, %v636
        %vm669 = vcmp.eq.s32.totalorder %v596, %v639
        %vm670 = vcmp.eq.s32.totalorder %v596, %v642
        %vm671 = vcmp.eq.s32.totalorder %v596, %v645
        %vm672 = vcmp.eq.s32.totalorder %v596, %v648
        %vm673 = vcmp.eq.s32.totalorder %v596, %v651
        %vm674 = vcmp.eq.s32.totalorder %v596, %v654
        %vm675 = vcmp.eq.s32.totalorder %v596, %v657
        %vm676 = vcmp.eq.s32.totalorder %v596, %v660
        %v677 = vsel %vm661, 1, 0
        %v678 = vsel %vm662, 1, 0
        %v679 = vsel %vm663, 1, 0
        %v680 = vsel %vm664, 1, 0
        %v681 = vsel %vm665, 1, 0
        %v682 = vsel %vm666, 1, 0
        %v683 = vsel %vm667, 1, 0
        %v684 = vsel %vm668, 1, 0
        %v685 = vsel %vm669, 1, 0
        %v686 = vsel %vm670, 1, 0
        %v687 = vsel %vm671, 1, 0
        %v688 = vsel %vm672, 1, 0
        %v689 = vsel %vm673, 1, 0
        %v690 = vsel %vm674, 1, 0
        %v691 = vsel %vm675, 1, 0
        %v692 = vsel %vm676, 1, 0
        %v693 = vcvt.s32.f32 %v677
        %v694 = vcvt.s32.f32 %v678
        %v695 = vcvt.s32.f32 %v679
        %v696 = vcvt.s32.f32 %v680
        %v697 = vcvt.s32.f32 %v681
        %v698 = vcvt.s32.f32 %v682
        %v699 = vcvt.s32.f32 %v683
        %v700 = vcvt.s32.f32 %v684
        %v701 = vcvt.s32.f32 %v685
        %v702 = vcvt.s32.f32 %v686
        %v703 = vcvt.s32.f32 %v687
        %v704 = vcvt.s32.f32 %v688
        %v705 = vcvt.s32.f32 %v689
        %v706 = vcvt.s32.f32 %v690
        %v707 = vcvt.s32.f32 %v691
        %v708 = vcvt.s32.f32 %v692
        %v709 = vpack.c.bf16 %v694, %v693
        %v710 = vpack.c.bf16 %v696, %v695
        %v711 = vpack.c.bf16 %v698, %v697
        %v712 = vpack.c.bf16 %v700, %v699
        %v713 = vpack.c.bf16 %v702, %v701
        %v714 = vpack.c.bf16 %v704, %v703
        %v715 = vpack.c.bf16 %v706, %v705
        %v716 = vpack.c.bf16 %v708, %v707
        %v717 = vld [vmem:[%s585] sm:$0xff]
        %v718 = vld [vmem:[%s585 + $0x8] sm:$0xff]
        %v719 = vld [vmem:[%s585 + $0x10] sm:$0xff]
        %v720 = vld [vmem:[%s585 + $0x18] sm:$0xff]
        %v721 = vld [vmem:[%s585 + $0x20] sm:$0xff]
        %v722 = vld [vmem:[%s585 + $0x28] sm:$0xff]
        %v723 = vld [vmem:[%s585 + $0x30] sm:$0xff]
        %v724 = vld [vmem:[%s585 + $0x38] sm:$0xff]
        %v725 = vld [vmem:[%s585 + $0x40] sm:$0xff]
        %v726 = vld [vmem:[%s585 + $0x48] sm:$0xff]
        %v727 = vld [vmem:[%s585 + $0x50] sm:$0xff]
        %v728 = vld [vmem:[%s585 + $0x58] sm:$0xff]
        %v729 = vld [vmem:[%s585 + $0x60] sm:$0xff]
        %v730 = vld [vmem:[%s585 + $0x68] sm:$0xff]
        %v731 = vld [vmem:[%s585 + $0x70] sm:$0xff]
        %v732 = vld [vmem:[%s585 + $0x78] sm:$0xff]
        %733 = vset.pattern.permute.xlu0 0
        %734 = vperm.xlu0 %733, %v717
        %v735 = vpop.permute.xlu0 %734
        %736 = vset.pattern.permute.xlu0 0
        %737 = vperm.xlu0 %736, %v718
        %v738 = vpop.permute.xlu0 %737
        %739 = vset.pattern.permute.xlu0 0
        %740 = vperm.xlu0 %739, %v719
        %v741 = vpop.permute.xlu0 %740
        %742 = vset.pattern.permute.xlu0 0
        %743 = vperm.xlu0 %742, %v720
        %v744 = vpop.permute.xlu0 %743
        %745 = vset.pattern.permute.xlu0 0
        %746 = vperm.xlu0 %745, %v721
        %v747 = vpop.permute.xlu0 %746
        %748 = vset.pattern.permute.xlu0 0
        %749 = vperm.xlu0 %748, %v722
        %v750 = vpop.permute.xlu0 %749
        %751 = vset.pattern.permute.xlu0 0
        %752 = vperm.xlu0 %751, %v723
        %v753 = vpop.permute.xlu0 %752
        %754 = vset.pattern.permute.xlu0 0
        %755 = vperm.xlu0 %754, %v724
        %v756 = vpop.permute.xlu0 %755
        %757 = vset.pattern.permute.xlu0 0
        %758 = vperm.xlu0 %757, %v725
        %v759 = vpop.permute.xlu0 %758
        %760 = vset.pattern.permute.xlu0 0
        %761 = vperm.xlu0 %760, %v726
        %v762 = vpop.permute.xlu0 %761
        %763 = vset.pattern.permute.xlu0 0
        %764 = vperm.xlu0 %763, %v727
        %v765 = vpop.permute.xlu0 %764
        %766 = vset.pattern.permute.xlu0 0
        %767 = vperm.xlu0 %766, %v728
        %v768 = vpop.permute.xlu0 %767
        %769 = vset.pattern.permute.xlu0 0
        %770 = vperm.xlu0 %769, %v729
        %v771 = vpop.permute.xlu0 %770
        %772 = vset.pattern.permute.xlu0 0
        %773 = vperm.xlu0 %772, %v730
        %v774 = vpop.permute.xlu0 %773
        %775 = vset.pattern.permute.xlu0 0
        %776 = vperm.xlu0 %775, %v731
        %v777 = vpop.permute.xlu0 %776
        %778 = vset.pattern.permute.xlu0 0
        %779 = vperm.xlu0 %778, %v732
        %v780 = vpop.permute.xlu0 %779
        %vm781 = vcmp.eq.s32.totalorder %v596, %v735
        %vm782 = vcmp.eq.s32.totalorder %v596, %v738
        %vm783 = vcmp.eq.s32.totalorder %v596, %v741
        %vm784 = vcmp.eq.s32.totalorder %v596, %v744
        %vm785 = vcmp.eq.s32.totalorder %v596, %v747
        %vm786 = vcmp.eq.s32.totalorder %v596, %v750
        %vm787 = vcmp.eq.s32.totalorder %v596, %v753
        %vm788 = vcmp.eq.s32.totalorder %v596, %v756
        %vm789 = vcmp.eq.s32.totalorder %v596, %v759
        %vm790 = vcmp.eq.s32.totalorder %v596, %v762
        %vm791 = vcmp.eq.s32.totalorder %v596, %v765
        %vm792 = vcmp.eq.s32.totalorder %v596, %v768
        %vm793 = vcmp.eq.s32.totalorder %v596, %v771
        %vm794 = vcmp.eq.s32.totalorder %v596, %v774
        %vm795 = vcmp.eq.s32.totalorder %v596, %v777
        %vm796 = vcmp.eq.s32.totalorder %v596, %v780
        %v797 = vsel %vm781, 1, 0
        %v798 = vsel %vm782, 1, 0
        %v799 = vsel %vm783, 1, 0
        %v800 = vsel %vm784, 1, 0
        %v801 = vsel %vm785, 1, 0
        %v802 = vsel %vm786, 1, 0
        %v803 = vsel %vm787, 1, 0
        %v804 = vsel %vm788, 1, 0
        %v805 = vsel %vm789, 1, 0
        %v806 = vsel %vm790, 1, 0
        %v807 = vsel %vm791, 1, 0
        %v808 = vsel %vm792, 1, 0
        %v809 = vsel %vm793, 1, 0
        %v810 = vsel %vm794, 1, 0
        %v811 = vsel %vm795, 1, 0
        %v812 = vsel %vm796, 1, 0
        %v813 = vcvt.s32.f32 %v797
        %v814 = vcvt.s32.f32 %v798
        %v815 = vcvt.s32.f32 %v799
        %v816 = vcvt.s32.f32 %v800
        %v817 = vcvt.s32.f32 %v801
        %v818 = vcvt.s32.f32 %v802
        %v819 = vcvt.s32.f32 %v803
        %v820 = vcvt.s32.f32 %v804
        %v821 = vcvt.s32.f32 %v805
        %v822 = vcvt.s32.f32 %v806
        %v823 = vcvt.s32.f32 %v807
        %v824 = vcvt.s32.f32 %v808
        %v825 = vcvt.s32.f32 %v809
        %v826 = vcvt.s32.f32 %v810
        %v827 = vcvt.s32.f32 %v811
        %v828 = vcvt.s32.f32 %v812
        %v829 = vpack.c.bf16 %v814, %v813
        %v830 = vpack.c.bf16 %v816, %v815
        %v831 = vpack.c.bf16 %v818, %v817
        %v832 = vpack.c.bf16 %v820, %v819
        %v833 = vpack.c.bf16 %v822, %v821
        %v834 = vpack.c.bf16 %v824, %v823
        %v835 = vpack.c.bf16 %v826, %v825
        %v836 = vpack.c.bf16 %v828, %v827
        %v837 = vld [vmem:[%s3] sm:$0xf]
        %v838 = vld [vmem:[%s3 + $0x4] sm:$0xf]
        %v839 = vld [vmem:[%s3 + $0x8] sm:$0xf]
        %v840 = vld [vmem:[%s4] sm:$0xf]
        %v841 = vld [vmem:[%s4 + $0x4] sm:$0xf]
        %v842 = vld [vmem:[%s4 + $0x8] sm:$0xf]
        %v846 = vunpack.c.l.b16 %v840
        %v847 = vunpack.c.l.b16 %v841
        %v848 = vunpack.c.l.b16 %v842
        %v849 = vpack.c.b16 %v847, %v846
        %v850 = vpack.c.b16 %v848, %v848
        %vm852 = vcmask 195584
        %v854 = vsel %vm852, %v829, 0
        %v857 = vsel %vm852, %v830, 0
        %v860 = vsel %vm852, %v831, 0
        %v863 = vsel %vm852, %v832, 0
        %v866 = vsel %vm852, %v833, 0
        %v869 = vsel %vm852, %v834, 0
        %v872 = vsel %vm852, %v835, 0
        %v875 = vsel %vm852, %v836, 0
        %vm877 = vcmask 1043456
        %v879 = vsel %vm877, %v850, 0
        %881 = vmatprep.subr.bf16.mxu0 0
        %882 = vmatpush1.bf16.msra.mxu0 %v849
        %883 = vmatprep.subr.bf16.mxu0 0
        %884 = vmatpush1.bf16.msra.mxu0 %v879
        %885 = vmatprep.subr.bf16.mxu0 0
        %886 = vmatpush1.bf16.msra.mxu0 0
        %887 = vmatprep.subr.bf16.mxu0 0
        %888 = vmatpush1.bf16.msra.mxu0 0
        %889 = vmatprep.subr.bf16.mxu0 0
        %890 = vmatpush1.bf16.msra.mxu0 0
        %891 = vmatprep.subr.bf16.mxu0 0
        %892 = vmatpush1.bf16.msra.mxu0 0
        %893 = vmatprep.subr.bf16.mxu0 0
        %894 = vmatpush1.bf16.msra.mxu0 0
        %895 = vmatprep.subr.bf16.mxu0 0
        %896 = vmatpush1.bf16.msra.mxu0 0
        %897 = vmatprep.subr.bf16.mxu0 0
        %898 = vmatpush1.bf16.msra.mxu0 0
        %899 = vmatprep.subr.bf16.mxu0 0
        %900 = vmatpush1.bf16.msra.mxu0 0
        %901 = vmatprep.subr.bf16.mxu0 0
        %902 = vmatpush1.bf16.msra.mxu0 0
        %903 = vmatprep.subr.bf16.mxu0 0
        %904 = vmatpush1.bf16.msra.mxu0 0
        %905 = vmatprep.subr.bf16.mxu0 0
        %906 = vmatpush1.bf16.msra.mxu0 0
        %907 = vmatprep.subr.bf16.mxu0 0
        %908 = vmatpush1.bf16.msra.mxu0 0
        %909 = vmatprep.subr.bf16.mxu0 0
        %910 = vmatpush1.bf16.msra.mxu0 0
        %911 = vmatprep.subr.bf16.mxu0 0
        %912 = vmatpush1.bf16.msra.mxu0 0
        %913 = vmatprep.mubr.bf16.mxu0 0
        %914 = vmatmul.mubr.bf16.gmra.mrb[0].mxu0 %v854
        %v915 = vpop.f32.mrb[0].mxu0
        %v916 = vadd.f32 0.0, %v915
        %v917 = vpop.f32.mrb[0].mxu0
        %v918 = vpop.f32.mrb[0].mxu0
        %v919 = vadd.f32 0.0, %v918
        %v920 = vpop.f32.mrb[0].mxu0
        %921 = vmatprep.mubr.bf16.mxu0 0
        %922 = vmatmul.mubr.bf16.gmra.mrb[0].mxu0 %v857
        %v923 = vpop.f32.mrb[0].mxu0
        %v924 = vadd.f32 0.0, %v923
        %v925 = vpop.f32.mrb[0].mxu0
        %v926 = vpop.f32.mrb[0].mxu0
        %v927 = vadd.f32 0.0, %v926
        %v928 = vpop.f32.mrb[0].mxu0
        %929 = vmatprep.mubr.bf16.mxu0 0
        %930 = vmatmul.mubr.bf16.gmra.mrb[0].mxu0 %v860
        %v931 = vpop.f32.mrb[0].mxu0
        %v932 = vadd.f32 0.0, %v931
        %v933 = vpop.f32.mrb[0].mxu0
        %v934 = vpop.f32.mrb[0].mxu0
        %v935 = vadd.f32 0.0, %v934
        %v936 = vpop.f32.mrb[0].mxu0
        %937 = vmatprep.mubr.bf16.mxu0 0
        %938 = vmatmul.mubr.bf16.gmra.mrb[0].mxu0 %v863
        %v939 = vpop.f32.mrb[0].mxu0
        %v940 = vadd.f32 0.0, %v939
        %v941 = vpop.f32.mrb[0].mxu0
        %v942 = vpop.f32.mrb[0].mxu0
        %v943 = vadd.f32 0.0, %v942
        %v944 = vpop.f32.mrb[0].mxu0
        %945 = vmatprep.mubr.bf16.mxu0 0
        %946 = vmatmul.mubr.bf16.gmra.mrb[0].mxu0 %v866
        %v947 = vpop.f32.mrb[0].mxu0
        %v948 = vadd.f32 0.0, %v947
        %v949 = vpop.f32.mrb[0].mxu0
        %v950 = vpop.f32.mrb[0].mxu0
        %v951 = vadd.f32 0.0, %v950
        %v952 = vpop.f32.mrb[0].mxu0
        %953 = vmatprep.mubr.bf16.mxu0 0
        %954 = vmatmul.mubr.bf16.gmra.mrb[0].mxu0 %v869
        %v955 = vpop.f32.mrb[0].mxu0
        %v956 = vadd.f32 0.0, %v955
        %v957 = vpop.f32.mrb[0].mxu0
        %v958 = vpop.f32.mrb[0].mxu0
        %v959 = vadd.f32 0.0, %v958
        %v960 = vpop.f32.mrb[0].mxu0
        %961 = vmatprep.mubr.bf16.mxu0 0
        %962 = vmatmul.mubr.bf16.gmra.mrb[0].mxu0 %v872
        %v963 = vpop.f32.mrb[0].mxu0
        %v964 = vadd.f32 0.0, %v963
        %v965 = vpop.f32.mrb[0].mxu0
        %v966 = vpop.f32.mrb[0].mxu0
        %v967 = vadd.f32 0.0, %v966
        %v968 = vpop.f32.mrb[0].mxu0
        %969 = vmatprep.mubr.bf16.mxu0 0
        %970 = vmatmul.mubr.bf16.gmra.mrb[0].mxu0 %v875
        %v971 = vpop.f32.mrb[0].mxu0
        %v972 = vadd.f32 0.0, %v971
        %v973 = vpop.f32.mrb[0].mxu0
        %v974 = vpop.f32.mrb[0].mxu0
        %v975 = vadd.f32 0.0, %v974
        %v976 = vpop.f32.mrb[0].mxu0
        %977 = vdwg.mxu0
        %v981 = vunpack.c.l.b16 %v837
        %v982 = vunpack.c.l.b16 %v838
        %v983 = vunpack.c.l.b16 %v839
        %v984 = vpack.c.b16 %v982, %v981
        %v985 = vpack.c.b16 %v983, %v983
        %v988 = vsel %vm852, %v709, 0
        %v991 = vsel %vm852, %v710, 0
        %v994 = vsel %vm852, %v711, 0
        %v997 = vsel %vm852, %v712, 0
        %v1000 = vsel %vm852, %v713, 0
        %v1003 = vsel %vm852, %v714, 0
        %v1006 = vsel %vm852, %v715, 0
        %v1009 = vsel %vm852, %v716, 0
        %v1012 = vsel %vm877, %v985, 0
        %1014 = vmatprep.subr.bf16.mxu0 0
        %1015 = vmatpush1.bf16.msra.mxu0 %v984
        %1016 = vmatprep.subr.bf16.mxu0 0
        %1017 = vmatpush1.bf16.msra.mxu0 %v1012
        %1018 = vmatprep.subr.bf16.mxu0 0
        %1019 = vmatpush1.bf16.msra.mxu0 0
        %1020 = vmatprep.subr.bf16.mxu0 0
        %1021 = vmatpush1.bf16.msra.mxu0 0
        %1022 = vmatprep.subr.bf16.mxu0 0
        %1023 = vmatpush1.bf16.msra.mxu0 0
        %1024 = vmatprep.subr.bf16.mxu0 0
        %1025 = vmatpush1.bf16.msra.mxu0 0
        %1026 = vmatprep.subr.bf16.mxu0 0
        %1027 = vmatpush1.bf16.msra.mxu0 0
        %1028 = vmatprep.subr.bf16.mxu0 0
        %1029 = vmatpush1.bf16.msra.mxu0 0
        %1030 = vmatprep.subr.bf16.mxu0 0
        %1031 = vmatpush1.bf16.msra.mxu0 0
        %1032 = vmatprep.subr.bf16.mxu0 0
        %1033 = vmatpush1.bf16.msra.mxu0 0
        %1034 = vmatprep.subr.bf16.mxu0 0
        %1035 = vmatpush1.bf16.msra.mxu0 0
        %1036 = vmatprep.subr.bf16.mxu0 0
        %1037 = vmatpush1.bf16.msra.mxu0 0
        %1038 = vmatprep.subr.bf16.mxu0 0
        %1039 = vmatpush1.bf16.msra.mxu0 0
        %1040 = vmatprep.subr.bf16.mxu0 0
        %1041 = vmatpush1.bf16.msra.mxu0 0
        %1042 = vmatprep.subr.bf16.mxu0 0
        %1043 = vmatpush1.bf16.msra.mxu0 0
        %1044 = vmatprep.subr.bf16.mxu0 0
        %1045 = vmatpush1.bf16.msra.mxu0 0
        %1046 = vmatprep.mubr.bf16.mxu0 0
        %1047 = vmatmul.mubr.bf16.gmra.mrb[0].mxu0 %v988
        %v1048 = vpop.f32.mrb[0].mxu0
        %v1049 = vadd.f32 %v916, %v1048
        %v1050 = vpop.f32.mrb[0].mxu0
        %v1051 = vpop.f32.mrb[0].mxu0
        %v1052 = vadd.f32 %v919, %v1051
        %v1053 = vpop.f32.mrb[0].mxu0
        %1054 = vmatprep.mubr.bf16.mxu0 0
        %1055 = vmatmul.mubr.bf16.gmra.mrb[0].mxu0 %v991
        %v1056 = vpop.f32.mrb[0].mxu0
        %v1057 = vadd.f32 %v924, %v1056
        %v1058 = vpop.f32.mrb[0].mxu0
        %v1059 = vpop.f32.mrb[0].mxu0
        %v1060 = vadd.f32 %v927, %v1059
        %v1061 = vpop.f32.mrb[0].mxu0
        %1062 = vmatprep.mubr.bf16.mxu0 0
        %1063 = vmatmul.mubr.bf16.gmra.mrb[0].mxu0 %v994
        %v1064 = vpop.f32.mrb[0].mxu0
        %v1065 = vadd.f32 %v932, %v1064
        %v1066 = vpop.f32.mrb[0].mxu0
        %v1067 = vpop.f32.mrb[0].mxu0
        %v1068 = vadd.f32 %v935, %v1067
        %v1069 = vpop.f32.mrb[0].mxu0
        %1070 = vmatprep.mubr.bf16.mxu0 0
        %1071 = vmatmul.mubr.bf16.gmra.mrb[0].mxu0 %v997
        %v1072 = vpop.f32.mrb[0].mxu0
        %v1073 = vadd.f32 %v940, %v1072
        %v1074 = vpop.f32.mrb[0].mxu0
        %v1075 = vpop.f32.mrb[0].mxu0
        %v1076 = vadd.f32 %v943, %v1075
        %v1077 = vpop.f32.mrb[0].mxu0
        %1078 = vmatprep.mubr.bf16.mxu0 0
        %1079 = vmatmul.mubr.bf16.gmra.mrb[0].mxu0 %v1000
        %v1080 = vpop.f32.mrb[0].mxu0
        %v1081 = vadd.f32 %v948, %v1080
        %v1082 = vpop.f32.mrb[0].mxu0
        %v1083 = vpop.f32.mrb[0].mxu0
        %v1084 = vadd.f32 %v951, %v1083
        %v1085 = vpop.f32.mrb[0].mxu0
        %1086 = vmatprep.mubr.bf16.mxu0 0
        %1087 = vmatmul.mubr.bf16.gmra.mrb[0].mxu0 %v1003
        %v1088 = vpop.f32.mrb[0].mxu0
        %v1089 = vadd.f32 %v956, %v1088
        %v1090 = vpop.f32.mrb[0].mxu0
        %v1091 = vpop.f32.mrb[0].mxu0
        %v1092 = vadd.f32 %v959, %v1091
        %v1093 = vpop.f32.mrb[0].mxu0
        %1094 = vmatprep.mubr.bf16.mxu0 0
        %1095 = vmatmul.mubr.bf16.gmra.mrb[0].mxu0 %v1006
        %v1096 = vpop.f32.mrb[0].mxu0
        %v1097 = vadd.f32 %v964, %v1096
        %v1098 = vpop.f32.mrb[0].mxu0
        %v1099 = vpop.f32.mrb[0].mxu0
        %v1100 = vadd.f32 %v967, %v1099
        %v1101 = vpop.f32.mrb[0].mxu0
        %1102 = vmatprep.mubr.bf16.mxu0 0
        %1103 = vmatmul.mubr.bf16.gmra.mrb[0].mxu0 %v1009
        %v1104 = vpop.f32.mrb[0].mxu0
        %v1105 = vadd.f32 %v972, %v1104
        %v1106 = vpop.f32.mrb[0].mxu0
        %v1107 = vpop.f32.mrb[0].mxu0
        %v1108 = vadd.f32 %v975, %v1107
        %v1109 = vpop.f32.mrb[0].mxu0
        %1110 = vdwg.mxu0
        %v1111 = vld [vmem:[%s591] sm:$0xff]
        %v1112 = vld [vmem:[%s591 + $0x8] sm:$0xff]
        %v1113 = vld [vmem:[%s591 + $0x10] sm:$0xff]
        %v1114 = vld [vmem:[%s591 + $0x18] sm:$0xff]
        %v1115 = vld [vmem:[%s591 + $0x20] sm:$0xff]
        %v1116 = vld [vmem:[%s591 + $0x28] sm:$0xff]
        %v1117 = vld [vmem:[%s591 + $0x30] sm:$0xff]
        %v1118 = vld [vmem:[%s591 + $0x38] sm:$0xff]
        %v1119 = vld [vmem:[%s591 + $0x40] sm:$0xff]
        %v1120 = vld [vmem:[%s591 + $0x48] sm:$0xff]
        %v1121 = vld [vmem:[%s591 + $0x50] sm:$0xff]
        %v1122 = vld [vmem:[%s591 + $0x58] sm:$0xff]
        %v1123 = vld [vmem:[%s591 + $0x60] sm:$0xff]
        %v1124 = vld [vmem:[%s591 + $0x68] sm:$0xff]
        %v1125 = vld [vmem:[%s591 + $0x70] sm:$0xff]
        %v1126 = vld [vmem:[%s591 + $0x78] sm:$0xff]
        %v1127 = vpack.c.bf16 %v1112, %v1111
        %v1128 = vpack.c.bf16 %v1114, %v1113
        %v1129 = vpack.c.bf16 %v1116, %v1115
        %v1130 = vpack.c.bf16 %v1118, %v1117
        %v1131 = vpack.c.bf16 %v1120, %v1119
        %v1132 = vpack.c.bf16 %v1122, %v1121
        %v1133 = vpack.c.bf16 %v1124, %v1123
        %v1134 = vpack.c.bf16 %v1126, %v1125
        %v1135 = vld [vmem:[%s5] sm:$0x7]
        %vm1136 = vcmask 48128
        %v1138 = vsel %vm1136, %v1127, 0
        %v1141 = vsel %vm1136, %v1128, 0
        %v1144 = vsel %vm1136, %v1129, 0
        %v1147 = vsel %vm1136, %v1130, 0
        %v1150 = vsel %vm1136, %v1131, 0
        %v1153 = vsel %vm1136, %v1132, 0
        %v1156 = vsel %vm1136, %v1133, 0
        %v1159 = vsel %vm1136, %v1134, 0
        %vm1161 = vcmask 1042432
        %v1163 = vsel %vm1161, %v1135, 0
        %1165 = vmatprep.subr.bf16.mxu0 0
        %1166 = vmatpush1.bf16.msra.mxu0 %v1163
        %1167 = vmatprep.subr.bf16.mxu0 0
        %1168 = vmatpush1.bf16.msra.mxu0 0
        %1169 = vmatprep.subr.bf16.mxu0 0
        %1170 = vmatpush1.bf16.msra.mxu0 0
        %1171 = vmatprep.subr.bf16.mxu0 0
        %1172 = vmatpush1.bf16.msra.mxu0 0
        %1173 = vmatprep.subr.bf16.mxu0 0
        %1174 = vmatpush1.bf16.msra.mxu0 0
        %1175 = vmatprep.subr.bf16.mxu0 0
        %1176 = vmatpush1.bf16.msra.mxu0 0
        %1177 = vmatprep.subr.bf16.mxu0 0
        %1178 = vmatpush1.bf16.msra.mxu0 0
        %1179 = vmatprep.subr.bf16.mxu0 0
        %1180 = vmatpush1.bf16.msra.mxu0 0
        %1181 = vmatprep.subr.bf16.mxu0 0
        %1182 = vmatpush1.bf16.msra.mxu0 0
        %1183 = vmatprep.subr.bf16.mxu0 0
        %1184 = vmatpush1.bf16.msra.mxu0 0
        %1185 = vmatprep.subr.bf16.mxu0 0
        %1186 = vmatpush1.bf16.msra.mxu0 0
        %1187 = vmatprep.subr.bf16.mxu0 0
        %1188 = vmatpush1.bf16.msra.mxu0 0
        %1189 = vmatprep.subr.bf16.mxu0 0
        %1190 = vmatpush1.bf16.msra.mxu0 0
        %1191 = vmatprep.subr.bf16.mxu0 0
        %1192 = vmatpush1.bf16.msra.mxu0 0
        %1193 = vmatprep.subr.bf16.mxu0 0
        %1194 = vmatpush1.bf16.msra.mxu0 0
        %1195 = vmatprep.subr.bf16.mxu0 0
        %1196 = vmatpush1.bf16.msra.mxu0 0
        %1197 = vmatprep.mubr.bf16.mxu0 0
        %1198 = vmatmul.mubr.bf16.gmra.mrb[0].mxu0 %v1138
        %v1199 = vpop.f32.mrb[0].mxu0
        %v1200 = vadd.f32 0.0, %v1199
        %v1201 = vpop.f32.mrb[0].mxu0
        %v1202 = vpop.f32.mrb[0].mxu0
        %v1203 = vadd.f32 0.0, %v1202
        %v1204 = vpop.f32.mrb[0].mxu0
        %1205 = vmatprep.mubr.bf16.mxu0 0
        %1206 = vmatmul.mubr.bf16.gmra.mrb[0].mxu0 %v1141
        %v1207 = vpop.f32.mrb[0].mxu0
        %v1208 = vadd.f32 0.0, %v1207
        %v1209 = vpop.f32.mrb[0].mxu0
        %v1210 = vpop.f32.mrb[0].mxu0
        %v1211 = vadd.f32 0.0, %v1210
        %v1212 = vpop.f32.mrb[0].mxu0
        %1213 = vmatprep.mubr.bf16.mxu0 0
        %1214 = vmatmul.mubr.bf16.gmra.mrb[0].mxu0 %v1144
        %v1215 = vpop.f32.mrb[0].mxu0
        %v1216 = vadd.f32 0.0, %v1215
        %v1217 = vpop.f32.mrb[0].mxu0
        %v1218 = vpop.f32.mrb[0].mxu0
        %v1219 = vadd.f32 0.0, %v1218
        %v1220 = vpop.f32.mrb[0].mxu0
        %1221 = vmatprep.mubr.bf16.mxu0 0
        %1222 = vmatmul.mubr.bf16.gmra.mrb[0].mxu0 %v1147
        %v1223 = vpop.f32.mrb[0].mxu0
        %v1224 = vadd.f32 0.0, %v1223
        %v1225 = vpop.f32.mrb[0].mxu0
        %v1226 = vpop.f32.mrb[0].mxu0
        %v1227 = vadd.f32 0.0, %v1226
        %v1228 = vpop.f32.mrb[0].mxu0
        %1229 = vmatprep.mubr.bf16.mxu0 0
        %1230 = vmatmul.mubr.bf16.gmra.mrb[0].mxu0 %v1150
        %v1231 = vpop.f32.mrb[0].mxu0
        %v1232 = vadd.f32 0.0, %v1231
        %v1233 = vpop.f32.mrb[0].mxu0
        %v1234 = vpop.f32.mrb[0].mxu0
        %v1235 = vadd.f32 0.0, %v1234
        %v1236 = vpop.f32.mrb[0].mxu0
        %1237 = vmatprep.mubr.bf16.mxu0 0
        %1238 = vmatmul.mubr.bf16.gmra.mrb[0].mxu0 %v1153
        %v1239 = vpop.f32.mrb[0].mxu0
        %v1240 = vadd.f32 0.0, %v1239
        %v1241 = vpop.f32.mrb[0].mxu0
        %v1242 = vpop.f32.mrb[0].mxu0
        %v1243 = vadd.f32 0.0, %v1242
        %v1244 = vpop.f32.mrb[0].mxu0
        %1245 = vmatprep.mubr.bf16.mxu0 0
        %1246 = vmatmul.mubr.bf16.gmra.mrb[0].mxu0 %v1156
        %v1247 = vpop.f32.mrb[0].mxu0
        %v1248 = vadd.f32 0.0, %v1247
        %v1249 = vpop.f32.mrb[0].mxu0
        %v1250 = vpop.f32.mrb[0].mxu0
        %v1251 = vadd.f32 0.0, %v1250
        %v1252 = vpop.f32.mrb[0].mxu0
        %1253 = vmatprep.mubr.bf16.mxu0 0
        %1254 = vmatmul.mubr.bf16.gmra.mrb[0].mxu0 %v1159
        %v1255 = vpop.f32.mrb[0].mxu0
        %v1256 = vadd.f32 0.0, %v1255
        %v1257 = vpop.f32.mrb[0].mxu0
        %v1258 = vpop.f32.mrb[0].mxu0
        %v1259 = vadd.f32 0.0, %v1258
        %v1260 = vpop.f32.mrb[0].mxu0
        %1261 = vdwg.mxu0
        %v1262 = vadd.f32 %v1049, %v1200
        %v1263 = vadd.f32 %v1052, %v1203
        %v1264 = vadd.f32 %v1057, %v1208
        %v1265 = vadd.f32 %v1060, %v1211
        %v1266 = vadd.f32 %v1065, %v1216
        %v1267 = vadd.f32 %v1068, %v1219
        %v1268 = vadd.f32 %v1073, %v1224
        %v1269 = vadd.f32 %v1076, %v1227
        %v1270 = vadd.f32 %v1081, %v1232
        %v1271 = vadd.f32 %v1084, %v1235
        %v1272 = vadd.f32 %v1089, %v1240
        %v1273 = vadd.f32 %v1092, %v1243
        %v1274 = vadd.f32 %v1097, %v1248
        %v1275 = vadd.f32 %v1100, %v1251
        %v1276 = vadd.f32 %v1105, %v1256
        %v1277 = vadd.f32 %v1108, %v1259
        %v1278 = vld [vmem:[%s6] sm:$0x1]
        %v1280 = vlaneseq
        %v1281 = vshrl.u32 %v1280, 7
        %v1282 = vsub.s32 0, %v1281
        %v1283 = vrot.slane %v1278, %v1282
        %v1285 = vadd.f32 %v1262, %v1283
        %v1286 = vadd.f32 %v1263, %v1283
        %v1287 = vadd.f32 %v1264, %v1283
        %v1288 = vadd.f32 %v1265, %v1283
        %v1289 = vadd.f32 %v1266, %v1283
        %v1290 = vadd.f32 %v1267, %v1283
        %v1291 = vadd.f32 %v1268, %v1283
        %v1292 = vadd.f32 %v1269, %v1283
        %v1293 = vadd.f32 %v1270, %v1283
        %v1294 = vadd.f32 %v1271, %v1283
        %v1295 = vadd.f32 %v1272, %v1283
        %v1296 = vadd.f32 %v1273, %v1283
        %v1297 = vadd.f32 %v1274, %v1283
        %v1298 = vadd.f32 %v1275, %v1283
        %v1299 = vadd.f32 %v1276, %v1283
        %v1300 = vadd.f32 %v1277, %v1283
        %v1301 = vmax.f32 %v1285, 0.0
        %v1302 = vmax.f32 %v1286, 0.0
        %v1303 = vmax.f32 %v1287, 0.0
        %v1304 = vmax.f32 %v1288, 0.0
        %v1305 = vmax.f32 %v1289, 0.0
        %v1306 = vmax.f32 %v1290, 0.0
        %v1307 = vmax.f32 %v1291, 0.0
        %v1308 = vmax.f32 %v1292, 0.0
        %v1309 = vmax.f32 %v1293, 0.0
        %v1310 = vmax.f32 %v1294, 0.0
        %v1311 = vmax.f32 %v1295, 0.0
        %v1312 = vmax.f32 %v1296, 0.0
        %v1313 = vmax.f32 %v1297, 0.0
        %v1314 = vmax.f32 %v1298, 0.0
        %v1315 = vmax.f32 %v1299, 0.0
        %v1316 = vmax.f32 %v1300, 0.0
        %v1317 = vpack.c.bf16 %v1302, %v1301
        %v1318 = vpack.c.bf16 %v1304, %v1303
        %v1319 = vpack.c.bf16 %v1306, %v1305
        %v1320 = vpack.c.bf16 %v1308, %v1307
        %v1321 = vpack.c.bf16 %v1310, %v1309
        %v1322 = vpack.c.bf16 %v1312, %v1311
        %v1323 = vpack.c.bf16 %v1314, %v1313
        %v1324 = vpack.c.bf16 %v1316, %v1315
        %v1325 = vld [vmem:[%s7] sm:$0xf]
        %v1326 = vld [vmem:[%s7 + $0x4] sm:$0xf]
        %v1327 = vld [vmem:[%s7 + $0x8] sm:$0xf]
        %v1328 = vld [vmem:[%s7 + $0xc] sm:$0xf]
        %v1329 = vld [vmem:[%s8] sm:$0x1]
        %v1331 = vlaneseq
        %v1332 = vshrl.u32 %v1331, 7
        %v1333 = vsub.s32 0, %v1332
        %v1334 = vrot.slane %v1329, %v1333
        %v1340 = vunpack.c.l.b16 %v1325
        %v1341 = vunpack.c.l.b16 %v1326
        %v1342 = vunpack.c.l.b16 %v1327
        %v1343 = vunpack.c.l.b16 %v1328
        %v1344 = vpack.c.b16 %v1341, %v1340
        %v1345 = vpack.c.b16 %v1343, %v1342
        %vm1348 = vcmask 261120
        %v1350 = vsel %vm1348, %v1317, 0
        %v1353 = vsel %vm1348, %v1318, 0
        %v1356 = vsel %vm1348, %v1319, 0
        %v1359 = vsel %vm1348, %v1320, 0
        %v1362 = vsel %vm1348, %v1321, 0
        %v1365 = vsel %vm1348, %v1322, 0
        %v1368 = vsel %vm1348, %v1323, 0
        %v1371 = vsel %vm1348, %v1324, 0
        %1373 = vmatprep.subr.bf16.mxu0 0
        %1374 = vmatpush1.bf16.msra.mxu0 %v1344
        %1375 = vmatprep.subr.bf16.mxu0 0
        %1376 = vmatpush1.bf16.msra.mxu0 %v1345
        %1377 = vmatprep.subr.bf16.mxu0 0
        %1378 = vmatpush1.bf16.msra.mxu0 0
        %1379 = vmatprep.subr.bf16.mxu0 0
        %1380 = vmatpush1.bf16.msra.mxu0 0
        %1381 = vmatprep.subr.bf16.mxu0 0
        %1382 = vmatpush1.bf16.msra.mxu0 0
        %1383 = vmatprep.subr.bf16.mxu0 0
        %1384 = vmatpush1.bf16.msra.mxu0 0
        %1385 = vmatprep.subr.bf16.mxu0 0
        %1386 = vmatpush1.bf16.msra.mxu0 0
        %1387 = vmatprep.subr.bf16.mxu0 0
        %1388 = vmatpush1.bf16.msra.mxu0 0
        %1389 = vmatprep.subr.bf16.mxu0 0
        %1390 = vmatpush1.bf16.msra.mxu0 0
        %1391 = vmatprep.subr.bf16.mxu0 0
        %1392 = vmatpush1.bf16.msra.mxu0 0
        %1393 = vmatprep.subr.bf16.mxu0 0
        %1394 = vmatpush1.bf16.msra.mxu0 0
        %1395 = vmatprep.subr.bf16.mxu0 0
        %1396 = vmatpush1.bf16.msra.mxu0 0
        %1397 = vmatprep.subr.bf16.mxu0 0
        %1398 = vmatpush1.bf16.msra.mxu0 0
        %1399 = vmatprep.subr.bf16.mxu0 0
        %1400 = vmatpush1.bf16.msra.mxu0 0
        %1401 = vmatprep.subr.bf16.mxu0 0
        %1402 = vmatpush1.bf16.msra.mxu0 0
        %1403 = vmatprep.subr.bf16.mxu0 0
        %1404 = vmatpush1.bf16.msra.mxu0 0
        %1405 = vmatprep.mubr.bf16.mxu0 0
        %1406 = vmatmul.mubr.bf16.gmra.mrb[0].mxu0 %v1350
        %v1407 = vpop.f32.mrb[0].mxu0
        %v1408 = vadd.f32 %v1334, %v1407
        %v1409 = vpop.f32.mrb[0].mxu0
        %v1410 = vpop.f32.mrb[0].mxu0
        %v1411 = vadd.f32 %v1334, %v1410
        %v1412 = vpop.f32.mrb[0].mxu0
        %1413 = vmatprep.mubr.bf16.mxu0 0
        %1414 = vmatmul.mubr.bf16.gmra.mrb[0].mxu0 %v1353
        %v1415 = vpop.f32.mrb[0].mxu0
        %v1416 = vadd.f32 %v1334, %v1415
        %v1417 = vpop.f32.mrb[0].mxu0
        %v1418 = vpop.f32.mrb[0].mxu0
        %v1419 = vadd.f32 %v1334, %v1418
        %v1420 = vpop.f32.mrb[0].mxu0
        %1421 = vmatprep.mubr.bf16.mxu0 0
        %1422 = vmatmul.mubr.bf16.gmra.mrb[0].mxu0 %v1356
        %v1423 = vpop.f32.mrb[0].mxu0
        %v1424 = vadd.f32 %v1334, %v1423
        %v1425 = vpop.f32.mrb[0].mxu0
        %v1426 = vpop.f32.mrb[0].mxu0
        %v1427 = vadd.f32 %v1334, %v1426
        %v1428 = vpop.f32.mrb[0].mxu0
        %1429 = vmatprep.mubr.bf16.mxu0 0
        %1430 = vmatmul.mubr.bf16.gmra.mrb[0].mxu0 %v1359
        %v1431 = vpop.f32.mrb[0].mxu0
        %v1432 = vadd.f32 %v1334, %v1431
        %v1433 = vpop.f32.mrb[0].mxu0
        %v1434 = vpop.f32.mrb[0].mxu0
        %v1435 = vadd.f32 %v1334, %v1434
        %v1436 = vpop.f32.mrb[0].mxu0
        %1437 = vmatprep.mubr.bf16.mxu0 0
        %1438 = vmatmul.mubr.bf16.gmra.mrb[0].mxu0 %v1362
        %v1439 = vpop.f32.mrb[0].mxu0
        %v1440 = vadd.f32 %v1334, %v1439
        %v1441 = vpop.f32.mrb[0].mxu0
        %v1442 = vpop.f32.mrb[0].mxu0
        %v1443 = vadd.f32 %v1334, %v1442
        %v1444 = vpop.f32.mrb[0].mxu0
        %1445 = vmatprep.mubr.bf16.mxu0 0
        %1446 = vmatmul.mubr.bf16.gmra.mrb[0].mxu0 %v1365
        %v1447 = vpop.f32.mrb[0].mxu0
        %v1448 = vadd.f32 %v1334, %v1447
        %v1449 = vpop.f32.mrb[0].mxu0
        %v1450 = vpop.f32.mrb[0].mxu0
        %v1451 = vadd.f32 %v1334, %v1450
        %v1452 = vpop.f32.mrb[0].mxu0
        %1453 = vmatprep.mubr.bf16.mxu0 0
        %1454 = vmatmul.mubr.bf16.gmra.mrb[0].mxu0 %v1368
        %v1455 = vpop.f32.mrb[0].mxu0
        %v1456 = vadd.f32 %v1334, %v1455
        %v1457 = vpop.f32.mrb[0].mxu0
        %v1458 = vpop.f32.mrb[0].mxu0
        %v1459 = vadd.f32 %v1334, %v1458
        %v1460 = vpop.f32.mrb[0].mxu0
        %1461 = vmatprep.mubr.bf16.mxu0 0
        %1462 = vmatmul.mubr.bf16.gmra.mrb[0].mxu0 %v1371
        %v1463 = vpop.f32.mrb[0].mxu0
        %v1464 = vadd.f32 %v1334, %v1463
        %v1465 = vpop.f32.mrb[0].mxu0
        %v1466 = vpop.f32.mrb[0].mxu0
        %v1467 = vadd.f32 %v1334, %v1466
        %v1468 = vpop.f32.mrb[0].mxu0
        %1469 = vdwg.mxu0
        %v1470 = vpack.c.bf16 %v1411, %v1408
        %v1471 = vpack.c.bf16 %v1419, %v1416
        %v1472 = vpack.c.bf16 %v1427, %v1424
        %v1473 = vpack.c.bf16 %v1435, %v1432
        %v1474 = vpack.c.bf16 %v1443, %v1440
        %v1475 = vpack.c.bf16 %v1451, %v1448
        %v1476 = vpack.c.bf16 %v1459, %v1456
        %v1477 = vpack.c.bf16 %v1467, %v1464
        %v1478 = vld [vmem:[%s9] sm:$0xf]
        %v1479 = vld [vmem:[%s9 + $0x4] sm:$0xf]
        %v1480 = vld [vmem:[%s9 + $0x8] sm:$0xf]
        %v1481 = vld [vmem:[%s9 + $0xc] sm:$0xf]
        %v1482 = vld [vmem:[%s10] sm:$0x1]
        %v1484 = vlaneseq
        %v1485 = vshrl.u32 %v1484, 7
        %v1486 = vsub.s32 0, %v1485
        %v1487 = vrot.slane %v1482, %v1486
        %v1493 = vunpack.c.l.b16 %v1478
        %v1494 = vunpack.c.l.b16 %v1479
        %v1495 = vunpack.c.l.b16 %v1480
        %v1496 = vunpack.c.l.b16 %v1481
        %v1497 = vpack.c.b16 %v1494, %v1493
        %v1498 = vpack.c.b16 %v1496, %v1495
        %v1502 = vsel %vm1348, %v1470, 0
        %v1505 = vsel %vm1348, %v1471, 0
        %v1508 = vsel %vm1348, %v1472, 0
        %v1511 = vsel %vm1348, %v1473, 0
        %v1514 = vsel %vm1348, %v1474, 0
        %v1517 = vsel %vm1348, %v1475, 0
        %v1520 = vsel %vm1348, %v1476, 0
        %v1523 = vsel %vm1348, %v1477, 0
        %1525 = vmatprep.subr.bf16.mxu0 0
        %1526 = vmatpush1.bf16.msra.mxu0 %v1497
        %1527 = vmatprep.subr.bf16.mxu0 0
        %1528 = vmatpush1.bf16.msra.mxu0 %v1498
        %1529 = vmatprep.subr.bf16.mxu0 0
        %1530 = vmatpush1.bf16.msra.mxu0 0
        %1531 = vmatprep.subr.bf16.mxu0 0
        %1532 = vmatpush1.bf16.msra.mxu0 0
        %1533 = vmatprep.subr.bf16.mxu0 0
        %1534 = vmatpush1.bf16.msra.mxu0 0
        %1535 = vmatprep.subr.bf16.mxu0 0
        %1536 = vmatpush1.bf16.msra.mxu0 0
        %1537 = vmatprep.subr.bf16.mxu0 0
        %1538 = vmatpush1.bf16.msra.mxu0 0
        %1539 = vmatprep.subr.bf16.mxu0 0
        %1540 = vmatpush1.bf16.msra.mxu0 0
        %1541 = vmatprep.subr.bf16.mxu0 0
        %1542 = vmatpush1.bf16.msra.mxu0 0
        %1543 = vmatprep.subr.bf16.mxu0 0
        %1544 = vmatpush1.bf16.msra.mxu0 0
        %1545 = vmatprep.subr.bf16.mxu0 0
        %1546 = vmatpush1.bf16.msra.mxu0 0
        %1547 = vmatprep.subr.bf16.mxu0 0
        %1548 = vmatpush1.bf16.msra.mxu0 0
        %1549 = vmatprep.subr.bf16.mxu0 0
        %1550 = vmatpush1.bf16.msra.mxu0 0
        %1551 = vmatprep.subr.bf16.mxu0 0
        %1552 = vmatpush1.bf16.msra.mxu0 0
        %1553 = vmatprep.subr.bf16.mxu0 0
        %1554 = vmatpush1.bf16.msra.mxu0 0
        %1555 = vmatprep.subr.bf16.mxu0 0
        %1556 = vmatpush1.bf16.msra.mxu0 0
        %1557 = vmatprep.mubr.bf16.mxu0 0
        %1558 = vmatmul.mubr.bf16.gmra.mrb[0].mxu0 %v1502
        %v1559 = vpop.f32.mrb[0].mxu0
        %v1560 = vadd.f32 %v1487, %v1559
        %v1561 = vpop.f32.mrb[0].mxu0
        %v1562 = vpop.f32.mrb[0].mxu0
        %v1563 = vadd.f32 %v1487, %v1562
        %v1564 = vpop.f32.mrb[0].mxu0
        %1565 = vmatprep.mubr.bf16.mxu0 0
        %1566 = vmatmul.mubr.bf16.gmra.mrb[0].mxu0 %v1505
        %v1567 = vpop.f32.mrb[0].mxu0
        %v1568 = vadd.f32 %v1487, %v1567
        %v1569 = vpop.f32.mrb[0].mxu0
        %v1570 = vpop.f32.mrb[0].mxu0
        %v1571 = vadd.f32 %v1487, %v1570
        %v1572 = vpop.f32.mrb[0].mxu0
        %1573 = vmatprep.mubr.bf16.mxu0 0
        %1574 = vmatmul.mubr.bf16.gmra.mrb[0].mxu0 %v1508
        %v1575 = vpop.f32.mrb[0].mxu0
        %v1576 = vadd.f32 %v1487, %v1575
        %v1577 = vpop.f32.mrb[0].mxu0
        %v1578 = vpop.f32.mrb[0].mxu0
        %v1579 = vadd.f32 %v1487, %v1578
        %v1580 = vpop.f32.mrb[0].mxu0
        %1581 = vmatprep.mubr.bf16.mxu0 0
        %1582 = vmatmul.mubr.bf16.gmra.mrb[0].mxu0 %v1511
        %v1583 = vpop.f32.mrb[0].mxu0
        %v1584 = vadd.f32 %v1487, %v1583
        %v1585 = vpop.f32.mrb[0].mxu0
        %v1586 = vpop.f32.mrb[0].mxu0
        %v1587 = vadd.f32 %v1487, %v1586
        %v1588 = vpop.f32.mrb[0].mxu0
        %1589 = vmatprep.mubr.bf16.mxu0 0
        %1590 = vmatmul.mubr.bf16.gmra.mrb[0].mxu0 %v1514
        %v1591 = vpop.f32.mrb[0].mxu0
        %v1592 = vadd.f32 %v1487, %v1591
        %v1593 = vpop.f32.mrb[0].mxu0
        %v1594 = vpop.f32.mrb[0].mxu0
        %v1595 = vadd.f32 %v1487, %v1594
        %v1596 = vpop.f32.mrb[0].mxu0
        %1597 = vmatprep.mubr.bf16.mxu0 0
        %1598 = vmatmul.mubr.bf16.gmra.mrb[0].mxu0 %v1517
        %v1599 = vpop.f32.mrb[0].mxu0
        %v1600 = vadd.f32 %v1487, %v1599
        %v1601 = vpop.f32.mrb[0].mxu0
        %v1602 = vpop.f32.mrb[0].mxu0
        %v1603 = vadd.f32 %v1487, %v1602
        %v1604 = vpop.f32.mrb[0].mxu0
        %1605 = vmatprep.mubr.bf16.mxu0 0
        %1606 = vmatmul.mubr.bf16.gmra.mrb[0].mxu0 %v1520
        %v1607 = vpop.f32.mrb[0].mxu0
        %v1608 = vadd.f32 %v1487, %v1607
        %v1609 = vpop.f32.mrb[0].mxu0
        %v1610 = vpop.f32.mrb[0].mxu0
        %v1611 = vadd.f32 %v1487, %v1610
        %v1612 = vpop.f32.mrb[0].mxu0
        %1613 = vmatprep.mubr.bf16.mxu0 0
        %1614 = vmatmul.mubr.bf16.gmra.mrb[0].mxu0 %v1523
        %v1615 = vpop.f32.mrb[0].mxu0
        %v1616 = vadd.f32 %v1487, %v1615
        %v1617 = vpop.f32.mrb[0].mxu0
        %v1618 = vpop.f32.mrb[0].mxu0
        %v1619 = vadd.f32 %v1487, %v1618
        %v1620 = vpop.f32.mrb[0].mxu0
        %1621 = vdwg.mxu0
        %v1622 = vmax.f32 %v1560, 0.0
        %v1623 = vmax.f32 %v1563, 0.0
        %v1624 = vmax.f32 %v1568, 0.0
        %v1625 = vmax.f32 %v1571, 0.0
        %v1626 = vmax.f32 %v1576, 0.0
        %v1627 = vmax.f32 %v1579, 0.0
        %v1628 = vmax.f32 %v1584, 0.0
        %v1629 = vmax.f32 %v1587, 0.0
        %v1630 = vmax.f32 %v1592, 0.0
        %v1631 = vmax.f32 %v1595, 0.0
        %v1632 = vmax.f32 %v1600, 0.0
        %v1633 = vmax.f32 %v1603, 0.0
        %v1634 = vmax.f32 %v1608, 0.0
        %v1635 = vmax.f32 %v1611, 0.0
        %v1636 = vmax.f32 %v1616, 0.0
        %v1637 = vmax.f32 %v1619, 0.0
        %v1638 = vpack.c.bf16 %v1623, %v1622
        %v1639 = vpack.c.bf16 %v1625, %v1624
        %v1640 = vpack.c.bf16 %v1627, %v1626
        %v1641 = vpack.c.bf16 %v1629, %v1628
        %v1642 = vpack.c.bf16 %v1631, %v1630
        %v1643 = vpack.c.bf16 %v1633, %v1632
        %v1644 = vpack.c.bf16 %v1635, %v1634
        %v1645 = vpack.c.bf16 %v1637, %v1636
        %v1646 = vld [vmem:[%s11] sm:$0xf]
        %v1647 = vld [vmem:[%s11 + $0x4] sm:$0xf]
        %v1648 = vld [vmem:[%s11 + $0x8] sm:$0xf]
        %v1649 = vld [vmem:[%s11 + $0xc] sm:$0xf]
        %v1650 = vld [vmem:[%s12] sm:$0x1]
        %v1652 = vlaneseq
        %v1653 = vshrl.u32 %v1652, 7
        %v1654 = vsub.s32 0, %v1653
        %v1655 = vrot.slane %v1650, %v1654
        %v1661 = vunpack.c.l.b16 %v1646
        %v1662 = vunpack.c.l.b16 %v1647
        %v1663 = vunpack.c.l.b16 %v1648
        %v1664 = vunpack.c.l.b16 %v1649
        %v1665 = vpack.c.b16 %v1662, %v1661
        %v1666 = vpack.c.b16 %v1664, %v1663
        %v1670 = vsel %vm1348, %v1638, 0
        %v1673 = vsel %vm1348, %v1639, 0
        %v1676 = vsel %vm1348, %v1640, 0
        %v1679 = vsel %vm1348, %v1641, 0
        %v1682 = vsel %vm1348, %v1642, 0
        %v1685 = vsel %vm1348, %v1643, 0
        %v1688 = vsel %vm1348, %v1644, 0
        %v1691 = vsel %vm1348, %v1645, 0
        %1693 = vmatprep.subr.bf16.mxu0 0
        %1694 = vmatpush1.bf16.msra.mxu0 %v1665
        %1695 = vmatprep.subr.bf16.mxu0 0
        %1696 = vmatpush1.bf16.msra.mxu0 %v1666
        %1697 = vmatprep.subr.bf16.mxu0 0
        %1698 = vmatpush1.bf16.msra.mxu0 0
        %1699 = vmatprep.subr.bf16.mxu0 0
        %1700 = vmatpush1.bf16.msra.mxu0 0
        %1701 = vmatprep.subr.bf16.mxu0 0
        %1702 = vmatpush1.bf16.msra.mxu0 0
        %1703 = vmatprep.subr.bf16.mxu0 0
        %1704 = vmatpush1.bf16.msra.mxu0 0
        %1705 = vmatprep.subr.bf16.mxu0 0
        %1706 = vmatpush1.bf16.msra.mxu0 0
        %1707 = vmatprep.subr.bf16.mxu0 0
        %1708 = vmatpush1.bf16.msra.mxu0 0
        %1709 = vmatprep.subr.bf16.mxu0 0
        %1710 = vmatpush1.bf16.msra.mxu0 0
        %1711 = vmatprep.subr.bf16.mxu0 0
        %1712 = vmatpush1.bf16.msra.mxu0 0
        %1713 = vmatprep.subr.bf16.mxu0 0
        %1714 = vmatpush1.bf16.msra.mxu0 0
        %1715 = vmatprep.subr.bf16.mxu0 0
        %1716 = vmatpush1.bf16.msra.mxu0 0
        %1717 = vmatprep.subr.bf16.mxu0 0
        %1718 = vmatpush1.bf16.msra.mxu0 0
        %1719 = vmatprep.subr.bf16.mxu0 0
        %1720 = vmatpush1.bf16.msra.mxu0 0
        %1721 = vmatprep.subr.bf16.mxu0 0
        %1722 = vmatpush1.bf16.msra.mxu0 0
        %1723 = vmatprep.subr.bf16.mxu0 0
        %1724 = vmatpush1.bf16.msra.mxu0 0
        %1725 = vmatprep.mubr.bf16.mxu0 0
        %1726 = vmatmul.mubr.bf16.gmra.mrb[0].mxu0 %v1670
        %v1727 = vpop.f32.mrb[0].mxu0
        %v1728 = vadd.f32 %v1655, %v1727
        %v1729 = vpop.f32.mrb[0].mxu0
        %v1730 = vpop.f32.mrb[0].mxu0
        %v1731 = vadd.f32 %v1655, %v1730
        %v1732 = vpop.f32.mrb[0].mxu0
        %1733 = vmatprep.mubr.bf16.mxu0 0
        %1734 = vmatmul.mubr.bf16.gmra.mrb[0].mxu0 %v1673
        %v1735 = vpop.f32.mrb[0].mxu0
        %v1736 = vadd.f32 %v1655, %v1735
        %v1737 = vpop.f32.mrb[0].mxu0
        %v1738 = vpop.f32.mrb[0].mxu0
        %v1739 = vadd.f32 %v1655, %v1738
        %v1740 = vpop.f32.mrb[0].mxu0
        %1741 = vmatprep.mubr.bf16.mxu0 0
        %1742 = vmatmul.mubr.bf16.gmra.mrb[0].mxu0 %v1676
        %v1743 = vpop.f32.mrb[0].mxu0
        %v1744 = vadd.f32 %v1655, %v1743
        %v1745 = vpop.f32.mrb[0].mxu0
        %v1746 = vpop.f32.mrb[0].mxu0
        %v1747 = vadd.f32 %v1655, %v1746
        %v1748 = vpop.f32.mrb[0].mxu0
        %1749 = vmatprep.mubr.bf16.mxu0 0
        %1750 = vmatmul.mubr.bf16.gmra.mrb[0].mxu0 %v1679
        %v1751 = vpop.f32.mrb[0].mxu0
        %v1752 = vadd.f32 %v1655, %v1751
        %v1753 = vpop.f32.mrb[0].mxu0
        %v1754 = vpop.f32.mrb[0].mxu0
        %v1755 = vadd.f32 %v1655, %v1754
        %v1756 = vpop.f32.mrb[0].mxu0
        %1757 = vmatprep.mubr.bf16.mxu0 0
        %1758 = vmatmul.mubr.bf16.gmra.mrb[0].mxu0 %v1682
        %v1759 = vpop.f32.mrb[0].mxu0
        %v1760 = vadd.f32 %v1655, %v1759
        %v1761 = vpop.f32.mrb[0].mxu0
        %v1762 = vpop.f32.mrb[0].mxu0
        %v1763 = vadd.f32 %v1655, %v1762
        %v1764 = vpop.f32.mrb[0].mxu0
        %1765 = vmatprep.mubr.bf16.mxu0 0
        %1766 = vmatmul.mubr.bf16.gmra.mrb[0].mxu0 %v1685
        %v1767 = vpop.f32.mrb[0].mxu0
        %v1768 = vadd.f32 %v1655, %v1767
        %v1769 = vpop.f32.mrb[0].mxu0
        %v1770 = vpop.f32.mrb[0].mxu0
        %v1771 = vadd.f32 %v1655, %v1770
        %v1772 = vpop.f32.mrb[0].mxu0
        %1773 = vmatprep.mubr.bf16.mxu0 0
        %1774 = vmatmul.mubr.bf16.gmra.mrb[0].mxu0 %v1688
        %v1775 = vpop.f32.mrb[0].mxu0
        %v1776 = vadd.f32 %v1655, %v1775
        %v1777 = vpop.f32.mrb[0].mxu0
        %v1778 = vpop.f32.mrb[0].mxu0
        %v1779 = vadd.f32 %v1655, %v1778
        %v1780 = vpop.f32.mrb[0].mxu0
        %1781 = vmatprep.mubr.bf16.mxu0 0
        %1782 = vmatmul.mubr.bf16.gmra.mrb[0].mxu0 %v1691
        %v1783 = vpop.f32.mrb[0].mxu0
        %v1784 = vadd.f32 %v1655, %v1783
        %v1785 = vpop.f32.mrb[0].mxu0
        %v1786 = vpop.f32.mrb[0].mxu0
        %v1787 = vadd.f32 %v1655, %v1786
        %v1788 = vpop.f32.mrb[0].mxu0
        %1789 = vdwg.mxu0
        %v1790 = vadd.f32 %v1728, %v1408
        %v1791 = vadd.f32 %v1731, %v1411
        %v1792 = vadd.f32 %v1736, %v1416
        %v1793 = vadd.f32 %v1739, %v1419
        %v1794 = vadd.f32 %v1744, %v1424
        %v1795 = vadd.f32 %v1747, %v1427
        %v1796 = vadd.f32 %v1752, %v1432
        %v1797 = vadd.f32 %v1755, %v1435
        %v1798 = vadd.f32 %v1760, %v1440
        %v1799 = vadd.f32 %v1763, %v1443
        %v1800 = vadd.f32 %v1768, %v1448
        %v1801 = vadd.f32 %v1771, %v1451
        %v1802 = vadd.f32 %v1776, %v1456
        %v1803 = vadd.f32 %v1779, %v1459
        %v1804 = vadd.f32 %v1784, %v1464
        %v1805 = vadd.f32 %v1787, %v1467
        %v1806 = vpack.c.bf16 %v1791, %v1790
        %v1807 = vpack.c.bf16 %v1793, %v1792
        %v1808 = vpack.c.bf16 %v1795, %v1794
        %v1809 = vpack.c.bf16 %v1797, %v1796
        %v1810 = vpack.c.bf16 %v1799, %v1798
        %v1811 = vpack.c.bf16 %v1801, %v1800
        %v1812 = vpack.c.bf16 %v1803, %v1802
        %v1813 = vpack.c.bf16 %v1805, %v1804
        %v1814 = vld [vmem:[%s13] sm:$0xf]
        %v1815 = vld [vmem:[%s13 + $0x4] sm:$0xf]
        %v1816 = vld [vmem:[%s13 + $0x8] sm:$0xf]
        %v1817 = vld [vmem:[%s13 + $0xc] sm:$0xf]
        %v1818 = vld [vmem:[%s14] sm:$0x1]
        %v1820 = vlaneseq
        %v1821 = vshrl.u32 %v1820, 7
        %v1822 = vsub.s32 0, %v1821
        %v1823 = vrot.slane %v1818, %v1822
        %v1829 = vunpack.c.l.b16 %v1814
        %v1830 = vunpack.c.l.b16 %v1815
        %v1831 = vunpack.c.l.b16 %v1816
        %v1832 = vunpack.c.l.b16 %v1817
        %v1833 = vpack.c.b16 %v1830, %v1829
        %v1834 = vpack.c.b16 %v1832, %v1831
        %v1838 = vsel %vm1348, %v1806, 0
        %v1841 = vsel %vm1348, %v1807, 0
        %v1844 = vsel %vm1348, %v1808, 0
        %v1847 = vsel %vm1348, %v1809, 0
        %v1850 = vsel %vm1348, %v1810, 0
        %v1853 = vsel %vm1348, %v1811, 0
        %v1856 = vsel %vm1348, %v1812, 0
        %v1859 = vsel %vm1348, %v1813, 0
        %1861 = vmatprep.subr.bf16.mxu0 0
        %1862 = vmatpush1.bf16.msra.mxu0 %v1833
        %1863 = vmatprep.subr.bf16.mxu0 0
        %1864 = vmatpush1.bf16.msra.mxu0 %v1834
        %1865 = vmatprep.subr.bf16.mxu0 0
        %1866 = vmatpush1.bf16.msra.mxu0 0
        %1867 = vmatprep.subr.bf16.mxu0 0
        %1868 = vmatpush1.bf16.msra.mxu0 0
        %1869 = vmatprep.subr.bf16.mxu0 0
        %1870 = vmatpush1.bf16.msra.mxu0 0
        %1871 = vmatprep.subr.bf16.mxu0 0
        %1872 = vmatpush1.bf16.msra.mxu0 0
        %1873 = vmatprep.subr.bf16.mxu0 0
        %1874 = vmatpush1.bf16.msra.mxu0 0
        %1875 = vmatprep.subr.bf16.mxu0 0
        %1876 = vmatpush1.bf16.msra.mxu0 0
        %1877 = vmatprep.subr.bf16.mxu0 0
        %1878 = vmatpush1.bf16.msra.mxu0 0
        %1879 = vmatprep.subr.bf16.mxu0 0
        %1880 = vmatpush1.bf16.msra.mxu0 0
        %1881 = vmatprep.subr.bf16.mxu0 0
        %1882 = vmatpush1.bf16.msra.mxu0 0
        %1883 = vmatprep.subr.bf16.mxu0 0
        %1884 = vmatpush1.bf16.msra.mxu0 0
        %1885 = vmatprep.subr.bf16.mxu0 0
        %1886 = vmatpush1.bf16.msra.mxu0 0
        %1887 = vmatprep.subr.bf16.mxu0 0
        %1888 = vmatpush1.bf16.msra.mxu0 0
        %1889 = vmatprep.subr.bf16.mxu0 0
        %1890 = vmatpush1.bf16.msra.mxu0 0
        %1891 = vmatprep.subr.bf16.mxu0 0
        %1892 = vmatpush1.bf16.msra.mxu0 0
        %1893 = vmatprep.mubr.bf16.mxu0 0
        %1894 = vmatmul.mubr.bf16.gmra.mrb[0].mxu0 %v1838
        %v1895 = vpop.f32.mrb[0].mxu0
        %v1896 = vadd.f32 %v1823, %v1895
        %v1897 = vpop.f32.mrb[0].mxu0
        %v1898 = vpop.f32.mrb[0].mxu0
        %v1899 = vadd.f32 %v1823, %v1898
        %v1900 = vpop.f32.mrb[0].mxu0
        %1901 = vmatprep.mubr.bf16.mxu0 0
        %1902 = vmatmul.mubr.bf16.gmra.mrb[0].mxu0 %v1841
        %v1903 = vpop.f32.mrb[0].mxu0
        %v1904 = vadd.f32 %v1823, %v1903
        %v1905 = vpop.f32.mrb[0].mxu0
        %v1906 = vpop.f32.mrb[0].mxu0
        %v1907 = vadd.f32 %v1823, %v1906
        %v1908 = vpop.f32.mrb[0].mxu0
        %1909 = vmatprep.mubr.bf16.mxu0 0
        %1910 = vmatmul.mubr.bf16.gmra.mrb[0].mxu0 %v1844
        %v1911 = vpop.f32.mrb[0].mxu0
        %v1912 = vadd.f32 %v1823, %v1911
        %v1913 = vpop.f32.mrb[0].mxu0
        %v1914 = vpop.f32.mrb[0].mxu0
        %v1915 = vadd.f32 %v1823, %v1914
        %v1916 = vpop.f32.mrb[0].mxu0
        %1917 = vmatprep.mubr.bf16.mxu0 0
        %1918 = vmatmul.mubr.bf16.gmra.mrb[0].mxu0 %v1847
        %v1919 = vpop.f32.mrb[0].mxu0
        %v1920 = vadd.f32 %v1823, %v1919
        %v1921 = vpop.f32.mrb[0].mxu0
        %v1922 = vpop.f32.mrb[0].mxu0
        %v1923 = vadd.f32 %v1823, %v1922
        %v1924 = vpop.f32.mrb[0].mxu0
        %1925 = vmatprep.mubr.bf16.mxu0 0
        %1926 = vmatmul.mubr.bf16.gmra.mrb[0].mxu0 %v1850
        %v1927 = vpop.f32.mrb[0].mxu0
        %v1928 = vadd.f32 %v1823, %v1927
        %v1929 = vpop.f32.mrb[0].mxu0
        %v1930 = vpop.f32.mrb[0].mxu0
        %v1931 = vadd.f32 %v1823, %v1930
        %v1932 = vpop.f32.mrb[0].mxu0
        %1933 = vmatprep.mubr.bf16.mxu0 0
        %1934 = vmatmul.mubr.bf16.gmra.mrb[0].mxu0 %v1853
        %v1935 = vpop.f32.mrb[0].mxu0
        %v1936 = vadd.f32 %v1823, %v1935
        %v1937 = vpop.f32.mrb[0].mxu0
        %v1938 = vpop.f32.mrb[0].mxu0
        %v1939 = vadd.f32 %v1823, %v1938
        %v1940 = vpop.f32.mrb[0].mxu0
        %1941 = vmatprep.mubr.bf16.mxu0 0
        %1942 = vmatmul.mubr.bf16.gmra.mrb[0].mxu0 %v1856
        %v1943 = vpop.f32.mrb[0].mxu0
        %v1944 = vadd.f32 %v1823, %v1943
        %v1945 = vpop.f32.mrb[0].mxu0
        %v1946 = vpop.f32.mrb[0].mxu0
        %v1947 = vadd.f32 %v1823, %v1946
        %v1948 = vpop.f32.mrb[0].mxu0
        %1949 = vmatprep.mubr.bf16.mxu0 0
        %1950 = vmatmul.mubr.bf16.gmra.mrb[0].mxu0 %v1859
        %v1951 = vpop.f32.mrb[0].mxu0
        %v1952 = vadd.f32 %v1823, %v1951
        %v1953 = vpop.f32.mrb[0].mxu0
        %v1954 = vpop.f32.mrb[0].mxu0
        %v1955 = vadd.f32 %v1823, %v1954
        %v1956 = vpop.f32.mrb[0].mxu0
        %1957 = vdwg.mxu0
        %v1958 = vmax.f32 %v1896, 0.0
        %v1959 = vmax.f32 %v1899, 0.0
        %v1960 = vmax.f32 %v1904, 0.0
        %v1961 = vmax.f32 %v1907, 0.0
        %v1962 = vmax.f32 %v1912, 0.0
        %v1963 = vmax.f32 %v1915, 0.0
        %v1964 = vmax.f32 %v1920, 0.0
        %v1965 = vmax.f32 %v1923, 0.0
        %v1966 = vmax.f32 %v1928, 0.0
        %v1967 = vmax.f32 %v1931, 0.0
        %v1968 = vmax.f32 %v1936, 0.0
        %v1969 = vmax.f32 %v1939, 0.0
        %v1970 = vmax.f32 %v1944, 0.0
        %v1971 = vmax.f32 %v1947, 0.0
        %v1972 = vmax.f32 %v1952, 0.0
        %v1973 = vmax.f32 %v1955, 0.0
        %v1974 = vpack.c.bf16 %v1959, %v1958
        %v1975 = vpack.c.bf16 %v1961, %v1960
        %v1976 = vpack.c.bf16 %v1963, %v1962
        %v1977 = vpack.c.bf16 %v1965, %v1964
        %v1978 = vpack.c.bf16 %v1967, %v1966
        %v1979 = vpack.c.bf16 %v1969, %v1968
        %v1980 = vpack.c.bf16 %v1971, %v1970
        %v1981 = vpack.c.bf16 %v1973, %v1972
        %v1982 = vld [vmem:[%s15] sm:$0xf]
        %v1983 = vld [vmem:[%s15 + $0x4] sm:$0xf]
        %v1984 = vld [vmem:[%s15 + $0x8] sm:$0xf]
        %v1985 = vld [vmem:[%s15 + $0xc] sm:$0xf]
        %v1986 = vld [vmem:[%s16] sm:$0x1]
        %v1988 = vlaneseq
        %v1989 = vshrl.u32 %v1988, 7
        %v1990 = vsub.s32 0, %v1989
        %v1991 = vrot.slane %v1986, %v1990
        %v1997 = vunpack.c.l.b16 %v1982
        %v1998 = vunpack.c.l.b16 %v1983
        %v1999 = vunpack.c.l.b16 %v1984
        %v2000 = vunpack.c.l.b16 %v1985
        %v2001 = vpack.c.b16 %v1998, %v1997
        %v2002 = vpack.c.b16 %v2000, %v1999
        %v2006 = vsel %vm1348, %v1974, 0
        %v2009 = vsel %vm1348, %v1975, 0
        %v2012 = vsel %vm1348, %v1976, 0
        %v2015 = vsel %vm1348, %v1977, 0
        %v2018 = vsel %vm1348, %v1978, 0
        %v2021 = vsel %vm1348, %v1979, 0
        %v2024 = vsel %vm1348, %v1980, 0
        %v2027 = vsel %vm1348, %v1981, 0
        %2029 = vmatprep.subr.bf16.mxu0 0
        %2030 = vmatpush1.bf16.msra.mxu0 %v2001
        %2031 = vmatprep.subr.bf16.mxu0 0
        %2032 = vmatpush1.bf16.msra.mxu0 %v2002
        %2033 = vmatprep.subr.bf16.mxu0 0
        %2034 = vmatpush1.bf16.msra.mxu0 0
        %2035 = vmatprep.subr.bf16.mxu0 0
        %2036 = vmatpush1.bf16.msra.mxu0 0
        %2037 = vmatprep.subr.bf16.mxu0 0
        %2038 = vmatpush1.bf16.msra.mxu0 0
        %2039 = vmatprep.subr.bf16.mxu0 0
        %2040 = vmatpush1.bf16.msra.mxu0 0
        %2041 = vmatprep.subr.bf16.mxu0 0
        %2042 = vmatpush1.bf16.msra.mxu0 0
        %2043 = vmatprep.subr.bf16.mxu0 0
        %2044 = vmatpush1.bf16.msra.mxu0 0
        %2045 = vmatprep.subr.bf16.mxu0 0
        %2046 = vmatpush1.bf16.msra.mxu0 0
        %2047 = vmatprep.subr.bf16.mxu0 0
        %2048 = vmatpush1.bf16.msra.mxu0 0
        %2049 = vmatprep.subr.bf16.mxu0 0
        %2050 = vmatpush1.bf16.msra.mxu0 0
        %2051 = vmatprep.subr.bf16.mxu0 0
        %2052 = vmatpush1.bf16.msra.mxu0 0
        %2053 = vmatprep.subr.bf16.mxu0 0
        %2054 = vmatpush1.bf16.msra.mxu0 0
        %2055 = vmatprep.subr.bf16.mxu0 0
        %2056 = vmatpush1.bf16.msra.mxu0 0
        %2057 = vmatprep.subr.bf16.mxu0 0
        %2058 = vmatpush1.bf16.msra.mxu0 0
        %2059 = vmatprep.subr.bf16.mxu0 0
        %2060 = vmatpush1.bf16.msra.mxu0 0
        %2061 = vmatprep.mubr.bf16.mxu0 0
        %2062 = vmatmul.mubr.bf16.gmra.mrb[0].mxu0 %v2006
        %v2063 = vpop.f32.mrb[0].mxu0
        %v2064 = vadd.f32 %v1991, %v2063
        %v2065 = vpop.f32.mrb[0].mxu0
        %v2066 = vpop.f32.mrb[0].mxu0
        %v2067 = vadd.f32 %v1991, %v2066
        %v2068 = vpop.f32.mrb[0].mxu0
        %2069 = vmatprep.mubr.bf16.mxu0 0
        %2070 = vmatmul.mubr.bf16.gmra.mrb[0].mxu0 %v2009
        %v2071 = vpop.f32.mrb[0].mxu0
        %v2072 = vadd.f32 %v1991, %v2071
        %v2073 = vpop.f32.mrb[0].mxu0
        %v2074 = vpop.f32.mrb[0].mxu0
        %v2075 = vadd.f32 %v1991, %v2074
        %v2076 = vpop.f32.mrb[0].mxu0
        %2077 = vmatprep.mubr.bf16.mxu0 0
        %2078 = vmatmul.mubr.bf16.gmra.mrb[0].mxu0 %v2012
        %v2079 = vpop.f32.mrb[0].mxu0
        %v2080 = vadd.f32 %v1991, %v2079
        %v2081 = vpop.f32.mrb[0].mxu0
        %v2082 = vpop.f32.mrb[0].mxu0
        %v2083 = vadd.f32 %v1991, %v2082
        %v2084 = vpop.f32.mrb[0].mxu0
        %2085 = vmatprep.mubr.bf16.mxu0 0
        %2086 = vmatmul.mubr.bf16.gmra.mrb[0].mxu0 %v2015
        %v2087 = vpop.f32.mrb[0].mxu0
        %v2088 = vadd.f32 %v1991, %v2087
        %v2089 = vpop.f32.mrb[0].mxu0
        %v2090 = vpop.f32.mrb[0].mxu0
        %v2091 = vadd.f32 %v1991, %v2090
        %v2092 = vpop.f32.mrb[0].mxu0
        %2093 = vmatprep.mubr.bf16.mxu0 0
        %2094 = vmatmul.mubr.bf16.gmra.mrb[0].mxu0 %v2018
        %v2095 = vpop.f32.mrb[0].mxu0
        %v2096 = vadd.f32 %v1991, %v2095
        %v2097 = vpop.f32.mrb[0].mxu0
        %v2098 = vpop.f32.mrb[0].mxu0
        %v2099 = vadd.f32 %v1991, %v2098
        %v2100 = vpop.f32.mrb[0].mxu0
        %2101 = vmatprep.mubr.bf16.mxu0 0
        %2102 = vmatmul.mubr.bf16.gmra.mrb[0].mxu0 %v2021
        %v2103 = vpop.f32.mrb[0].mxu0
        %v2104 = vadd.f32 %v1991, %v2103
        %v2105 = vpop.f32.mrb[0].mxu0
        %v2106 = vpop.f32.mrb[0].mxu0
        %v2107 = vadd.f32 %v1991, %v2106
        %v2108 = vpop.f32.mrb[0].mxu0
        %2109 = vmatprep.mubr.bf16.mxu0 0
        %2110 = vmatmul.mubr.bf16.gmra.mrb[0].mxu0 %v2024
        %v2111 = vpop.f32.mrb[0].mxu0
        %v2112 = vadd.f32 %v1991, %v2111
        %v2113 = vpop.f32.mrb[0].mxu0
        %v2114 = vpop.f32.mrb[0].mxu0
        %v2115 = vadd.f32 %v1991, %v2114
        %v2116 = vpop.f32.mrb[0].mxu0
        %2117 = vmatprep.mubr.bf16.mxu0 0
        %2118 = vmatmul.mubr.bf16.gmra.mrb[0].mxu0 %v2027
        %v2119 = vpop.f32.mrb[0].mxu0
        %v2120 = vadd.f32 %v1991, %v2119
        %v2121 = vpop.f32.mrb[0].mxu0
        %v2122 = vpop.f32.mrb[0].mxu0
        %v2123 = vadd.f32 %v1991, %v2122
        %v2124 = vpop.f32.mrb[0].mxu0
        %2125 = vdwg.mxu0
        %v2126 = vmax.f32 %v2064, 0.0
        %v2127 = vmax.f32 %v2067, 0.0
        %v2128 = vmax.f32 %v2072, 0.0
        %v2129 = vmax.f32 %v2075, 0.0
        %v2130 = vmax.f32 %v2080, 0.0
        %v2131 = vmax.f32 %v2083, 0.0
        %v2132 = vmax.f32 %v2088, 0.0
        %v2133 = vmax.f32 %v2091, 0.0
        %v2134 = vmax.f32 %v2096, 0.0
        %v2135 = vmax.f32 %v2099, 0.0
        %v2136 = vmax.f32 %v2104, 0.0
        %v2137 = vmax.f32 %v2107, 0.0
        %v2138 = vmax.f32 %v2112, 0.0
        %v2139 = vmax.f32 %v2115, 0.0
        %v2140 = vmax.f32 %v2120, 0.0
        %v2141 = vmax.f32 %v2123, 0.0
        %2142 = vst [vmem:[%s574] sm:$0xff] %v2126
        %2143 = vst [vmem:[%s574 + $0x8] sm:$0xff] %v2127
        %2144 = vst [vmem:[%s574 + $0x10] sm:$0xff] %v2128
        %2145 = vst [vmem:[%s574 + $0x18] sm:$0xff] %v2129
        %2146 = vst [vmem:[%s574 + $0x20] sm:$0xff] %v2130
        %2147 = vst [vmem:[%s574 + $0x28] sm:$0xff] %v2131
        %2148 = vst [vmem:[%s574 + $0x30] sm:$0xff] %v2132
        %2149 = vst [vmem:[%s574 + $0x38] sm:$0xff] %v2133
        %2150 = vst [vmem:[%s574 + $0x40] sm:$0xff] %v2134
        %2151 = vst [vmem:[%s574 + $0x48] sm:$0xff] %v2135
        %2152 = vst [vmem:[%s574 + $0x50] sm:$0xff] %v2136
        %2153 = vst [vmem:[%s574 + $0x58] sm:$0xff] %v2137
        %2154 = vst [vmem:[%s574 + $0x60] sm:$0xff] %v2138
        %2155 = vst [vmem:[%s574 + $0x68] sm:$0xff] %v2139
        %2156 = vst [vmem:[%s574 + $0x70] sm:$0xff] %v2140
        %2157 = vst [vmem:[%s574 + $0x78] sm:$0xff] %v2141
        %s2158 = sand.u32 %s411, 1
        %s2159 = scalar_lea.sflag [#allocation3], %s2158
        %s2160 = sand.u32 %s411, 1
        %s2161 = smul.addr %s2160, 128
        %s2162 = scalar_lea.vmem [#allocation2], %s2161
        // Predicated region
        $region89: #{tpu_custom_call.1} parent=87 // pred_check
          %p2163 = pneg %p421
        $region90: #{tpu_custom_call.1} parent=87 // pred_check_branch
          %2165 = sbr.rel (%p2163) target = $region92
        $region91: #{tpu_custom_call.1} parent=87 // pred_region
          %s2166 = smul.u32 16, %s31
          %s2168 = ssub.s32 2048, 2048
          %2169 = vsyncadd %s2159, %s2168
          %s2170 = smul.addr %s2166, 128
          %s2171 = scalar_lea.hbm %s17, %s2170
          %s2172 = sshll.u32 %s2162, 4
          %s2173 = int_to_ptr.vmem [resolvable:$true] %s2172
          %2178 = dma.vmem_to_hbm [thread:$0]  %s2173, 2048, %s2171, %s2159, 128, 128, 8
        $region92: #{tpu_custom_call.1} parent=87 // pred_fallthru
          _
      $region88: #{tpu_custom_call.1} parent=5 // pred_fallthru
        _
      %p2179 = scmp.le.s32.totalorder 2, %s26
      // Predicated region
      $region93: #{tpu_custom_call.1} parent=5 // pred_check
        %p2180 = pneg %p2179
      $region94: #{tpu_custom_call.1} parent=5 // pred_check_branch
        %2182 = sbr.rel (%p2180) target = $region96
      $region95: #{tpu_custom_call.1} parent=5 // pred_region
        %s2183 = ssub.s32 %s26, 2
        // Predicated region
        $region97: #{tpu_custom_call.1} parent=95 // pred_check
          %p2184 = pneg %p427
        $region98: #{tpu_custom_call.1} parent=95 // pred_check_branch
          %2186 = sbr.rel (%p2184) target = $region100
        $region99: #{tpu_custom_call.1} parent=95 // pred_region
          %s2187 = sand.u32 %s412, 1
          %s2188 = scalar_lea.sflag [#allocation3], %s2187
          %s2189 = sand.u32 %s412, 1
          %s2190 = smul.addr %s2189, 128
          %s2191 = scalar_lea.vmem [#allocation2], %s2190
          %2192 = dma.done %s2188, 2048
        $region100: #{tpu_custom_call.1} parent=95 // pred_fallthru
          _
      $region96: #{tpu_custom_call.1} parent=5 // pred_fallthru
        _
    $region6: #{tpu_custom_call.1} parent=1 // loop_footer
      %s30 = sadd.s32 1, %s26
    $region7: #{tpu_custom_call.1} parent=1 // loop_footer_branch
      %25 = sbr.rel target = $region3
    $region8: #{tpu_custom_call.1} parent=1 // loop_exit
      _
    %2193 = vsyncpa [#allocation3], 1
    %s2194 = scalar_lea.sflag [#allocation3], 1
    %2195 = vsyncpa %s2194, 1

</llo_original>
